<compile_context>
chip_gen: v7x
topology: tpu7x:2x2x1
jax: 0.10.0
libtpu: 0.0.40
codegen_flags: <defaults>
</compile_context>

<pallas_src>
import functools
import math

import jax
import jax.numpy as jnp
import numpy as np
from jax import lax
from jax.experimental import pallas as pl
from jax.experimental.pallas import tpu as pltpu


# ----------------------------------------------------------------------------
# Kernel (single invocation handles the whole batch)
# ----------------------------------------------------------------------------
def _self_attn_layer_kernel(tgt_ref, pos_ref, wqkv_ref, bqkv_ref, wo_ref, vec_ref,
                            o_ref, ctx_ref, *, nhead: int):
    L, B, D = tgt_ref.shape
    dh = D // nhead
    scale = 1.0 / math.sqrt(dh)
    BL = B * L

    x3 = tgt_ref[...].astype(jnp.float32)            # (L, B, D)  value path (tgt)
    qk3 = x3 + pos_ref[...].astype(jnp.float32)      # (L, B, D)  q = k = tgt + query_pos

    # Batch-major token rows built from cheap 2-D slices (no wrapper transpose needed):
    #   rows[      b*L : (b+1)*L ] = (tgt + pos)[:, b, :]   -> source of Q and K
    #   rows[ BL + b*L : ...     ] = tgt[:, b, :]           -> source of V / residual
    qk_rows = jnp.concatenate([qk3[:, b, :] for b in range(B)], axis=0)   # (BL, D)
    x_rows = jnp.concatenate([x3[:, b, :] for b in range(B)], axis=0)     # (BL, D)
    all_rows = jnp.concatenate([qk_rows, x_rows], axis=0)                 # (2*BL, D)

    # Fused QKV in-projection for the whole batch: a single MXU call.
    # Bias is added over all lanes; rows only ever read their "correct" lane ranges.
    y = jnp.dot(all_rows, wqkv_ref[...], preferred_element_type=jnp.float32)
    y = y + bqkv_ref[...]                                                 # (2*BL, 3D)

    # Per-(batch, head) scaled-dot-product attention.  Each head's context is written
    # into the VMEM scratch at its static lane offset (no lane-concat of dh-wide parts).
    for b in range(B):
        r = b * L
        for h in range(nhead):
            c = h * dh
            qh = y[r:r + L, c:c + dh]                                     # (L, dh)
            kh = y[r:r + L, D + c:D + c + dh]                             # (L, dh)
            vh = y[BL + r:BL + r + L, 2 * D + c:2 * D + c + dh]           # (L, dh)
            s = jnp.dot(qh, kh.T, preferred_element_type=jnp.float32) * scale
            s = s - jnp.max(s, axis=-1, keepdims=True)
            p = jnp.exp(s)
            p = p * pl.reciprocal(jnp.sum(p, axis=-1, keepdims=True), approx=False)
            ctx_ref[r:r + L, c:c + dh] = jnp.dot(p, vh,
                                                 preferred_element_type=jnp.float32)

    # Batched output projection + residual + LayerNorm on the full (BL, D) row slab.
    vecs = vec_ref[...]                                                   # (3, D)
    attn = jnp.dot(ctx_ref[...], wo_ref[...], preferred_element_type=jnp.float32)
    attn = attn + vecs[0:1, :]                                            # + out_proj bias
    yres = x_rows + attn                                                  # residual (dropout=0)
    mu = jnp.mean(yres, axis=-1, keepdims=True)
    var = jnp.mean((yres - mu) ** 2, axis=-1, keepdims=True)
    yhat = (yres - mu) * lax.rsqrt(var + 1e-5)                            # eps = 1e-5 (torch)
    out_rows = yhat * vecs[1:2, :] + vecs[2:3, :]                         # gamma, beta

    # Re-assemble the native (L, B, D) layout and store the full block once.
    out3 = jnp.concatenate(
        [out_rows[b * L:(b + 1) * L, :].reshape(L, 1, D) for b in range(B)], axis=1)
    o_ref[...] = out3.astype(o_ref.dtype)


# ----------------------------------------------------------------------------
# Wrapper — no layout transposes, full-array blocks, packed parameters
# ----------------------------------------------------------------------------
def self_attention_layer(tgt, query_pos, params, *, nhead: int):
    """tgt, query_pos: (L, B, D) — nn.MultiheadAttention (batch_first=False) layout."""
    L, B, D = tgt.shape

    def full(shape):
        return pl.BlockSpec(shape, lambda i, _s=shape: (0,) * len(_s))

    kernel = functools.partial(_self_attn_layer_kernel, nhead=nhead)

    return pl.pallas_call(
        kernel,
        out_shape=jax.ShapeDtypeStruct((L, B, D), tgt.dtype),
        grid=(1,),
        in_specs=[
            full((L, B, D)), full((L, B, D)),        # tgt, query_pos
            full((D, 3 * D)), full((1, 3 * D)),      # fused W_qkv, b_qkv
            full((D, D)), full((3, D)),              # W_o, [b_o; gamma; beta]
        ],
        out_specs=full((L, B, D)),
        scratch_shapes=[pltpu.VMEM((B * L, D), jnp.float32)],   # per-head ctx assembly
        compiler_params=pltpu.CompilerParams(
            dimension_semantics=("arbitrary",)),
    )(tgt, query_pos,
      params["w_qkv"], params["b_qkv"], params["w_o"], params["vecs"])


# ----------------------------------------------------------------------------
# Parameter init (mirrors module shapes + _reset_parameters; packed layout)
# ----------------------------------------------------------------------------
def _xavier_uniform(key, shape):
    fan_out, fan_in = shape
    bound = math.sqrt(6.0 / (fan_in + fan_out))
    return jax.random.uniform(key, shape, jnp.float32, -bound, bound)


def init_params(key, d_model):
    k1, k2 = jax.random.split(key)
    # nn.MultiheadAttention.in_proj_weight: (3D, D) xavier-uniform; in_proj_bias = 0.
    in_proj_w = _xavier_uniform(k1, (3 * d_model, d_model))
    # out_proj: Linear(D, D); weight xavier-uniform via _reset_parameters, bias = 0.
    out_w = _xavier_uniform(k2, (d_model, d_model))
    return {
        # Pre-transposed fused in-projection: y = x @ W_qkv gives [q | k | v] lanes.
        "w_qkv": in_proj_w.T,                                    # (D, 3D)
        "b_qkv": jnp.zeros((1, 3 * d_model), jnp.float32),       # in_proj_bias
        "w_o": out_w.T,                                          # (D, D), y = x @ W_o
        # Packed vectors: rows = [out_proj bias, LayerNorm gamma, LayerNorm beta].
        "vecs": jnp.stack([jnp.zeros((d_model,), jnp.float32),
                           jnp.ones((d_model,), jnp.float32),
                           jnp.zeros((d_model,), jnp.float32)], axis=0),
    }


# ----------------------------------------------------------------------------
# Pure-JAX reference (for correctness check)
# ----------------------------------------------------------------------------
def reference(tgt, query_pos, params, *, nhead):
    L, B, D = tgt.shape
    dh = D // nhead
    w_qkv, b_qkv, w_o, vecs = (params["w_qkv"], params["b_qkv"],
                               params["w_o"], params["vecs"])
    x = jnp.transpose(tgt, (1, 0, 2)).astype(jnp.float32)
    pos = jnp.transpose(query_pos, (1, 0, 2)).astype(jnp.float32)
    qk = x + pos
    q = qk @ w_qkv[:, :D] + b_qkv[:, :D]
    k = qk @ w_qkv[:, D:2 * D] + b_qkv[:, D:2 * D]
    v = x @ w_qkv[:, 2 * D:] + b_qkv[:, 2 * D:]
    q = q.reshape(B, L, nhead, dh)
    k = k.reshape(B, L, nhead, dh)
    v = v.reshape(B, L, nhead, dh)
    s = jnp.einsum("blhd,bmhd->bhlm", q, k) / math.sqrt(dh)
    p = jax.nn.softmax(s, axis=-1)
    ctx = jnp.einsum("bhlm,bmhd->blhd", p, v).reshape(B, L, D)
    attn = ctx @ w_o + vecs[0]
    y = x + attn
    mu = y.mean(-1, keepdims=True)
    var = ((y - mu) ** 2).mean(-1, keepdims=True)
    out = (y - mu) * lax.rsqrt(var + 1e-5) * vecs[1] + vecs[2]
    return jnp.transpose(out, (1, 0, 2))


# ----------------------------------------------------------------------------
if __name__ == "__main__":
    L, B, D, NHEAD = 8, 2, 32, 4     # seq=8, batch=2, d_model=32, nhead=4

    key = jax.random.PRNGKey(0)
    k_tgt, k_pos, k_par = jax.random.split(key, 3)
    tgt = jax.random.normal(k_tgt, (L, B, D), jnp.float32)
    query_pos = jax.random.normal(k_pos, (L, B, D), jnp.float32)
    params = init_params(k_par, D)

    out = self_attention_layer(tgt, query_pos, params, nhead=NHEAD)
    out = jax.block_until_ready(out)

    ref = reference(tgt, query_pos, params, nhead=NHEAD)
    np.testing.assert_allclose(np.asarray(out), np.asarray(ref), rtol=1e-4, atol=1e-4)

    print("KERNEL_OK")
</pallas_src>

<mosaic_0001>
module attributes {stable_mosaic.version = 11 : i64} {
  func.func @_self_attn_layer_kernel(%arg0: i32, %arg1: memref<8x2x32xf32, #tpu.memory_space<vmem>>, %arg2: memref<8x2x32xf32, #tpu.memory_space<vmem>>, %arg3: memref<32x96xf32, #tpu.memory_space<vmem>>, %arg4: memref<1x96xf32, #tpu.memory_space<vmem>>, %arg5: memref<32x32xf32, #tpu.memory_space<vmem>>, %arg6: memref<3x32xf32, #tpu.memory_space<vmem>>, %arg7: memref<8x2x32xf32, #tpu.memory_space<vmem>>, %arg8: memref<16x32xf32, #tpu.memory_space<vmem>>) attributes {dimension_semantics = [#tpu.dimension_semantics<arbitrary>], iteration_bounds = array<i64: 1>, scalar_prefetch = 0 : i64, scratch_operands = 1 : i64, tpu.core_type = #tpu.core_type<tc>, window_params = [{pipeline_mode = #tpu.pipeline_mode<synchronous>, transform_indices = @transform_0, window_bounds = array<i64: 8, 2, 32>}, {pipeline_mode = #tpu.pipeline_mode<synchronous>, transform_indices = @transform_1, window_bounds = array<i64: 8, 2, 32>}, {pipeline_mode = #tpu.pipeline_mode<synchronous>, transform_indices = @transform_2, window_bounds = array<i64: 32, 96>}, {pipeline_mode = #tpu.pipeline_mode<synchronous>, transform_indices = @transform_3, window_bounds = array<i64: 1, 96>}, {pipeline_mode = #tpu.pipeline_mode<synchronous>, transform_indices = @transform_4, window_bounds = array<i64: 32, 32>}, {pipeline_mode = #tpu.pipeline_mode<synchronous>, transform_indices = @transform_5, window_bounds = array<i64: 3, 32>}, {pipeline_mode = #tpu.pipeline_mode<synchronous>, transform_indices = @transform_6, window_bounds = array<i64: 8, 2, 32>}]} {
    %c0 = arith.constant 0 : index
    %c0_0 = arith.constant 0 : index
    %c0_1 = arith.constant 0 : index
    %0 = vector.load %arg1[%c0, %c0_0, %c0_1] : memref<8x2x32xf32, #tpu.memory_space<vmem>>, vector<8x2x32xf32>
    %c0_2 = arith.constant 0 : index
    %c0_3 = arith.constant 0 : index
    %c0_4 = arith.constant 0 : index
    %1 = vector.load %arg2[%c0_2, %c0_3, %c0_4] : memref<8x2x32xf32, #tpu.memory_space<vmem>>, vector<8x2x32xf32>
    %2 = arith.addf %0, %1 : vector<8x2x32xf32>
    %3 = vector.extract_strided_slice %2 {offsets = [0, 0, 0], sizes = [8, 1, 32], strides = [1, 1, 1]} : vector<8x2x32xf32> to vector<8x1x32xf32>
    %4 = vector.shape_cast %3 : vector<8x1x32xf32> to vector<8x32xf32>
    %5 = vector.extract_strided_slice %2 {offsets = [0, 1, 0], sizes = [8, 1, 32], strides = [1, 1, 1]} : vector<8x2x32xf32> to vector<8x1x32xf32>
    %6 = vector.shape_cast %5 : vector<8x1x32xf32> to vector<8x32xf32>
    %7 = tpu.concatenate %4, %6 in 0 : vector<8x32xf32>, vector<8x32xf32> -> vector<16x32xf32>
    %8 = vector.extract_strided_slice %0 {offsets = [0, 0, 0], sizes = [8, 1, 32], strides = [1, 1, 1]} : vector<8x2x32xf32> to vector<8x1x32xf32>
    %9 = vector.shape_cast %8 : vector<8x1x32xf32> to vector<8x32xf32>
    %10 = vector.extract_strided_slice %0 {offsets = [0, 1, 0], sizes = [8, 1, 32], strides = [1, 1, 1]} : vector<8x2x32xf32> to vector<8x1x32xf32>
    %11 = vector.shape_cast %10 : vector<8x1x32xf32> to vector<8x32xf32>
    %12 = tpu.concatenate %9, %11 in 0 : vector<8x32xf32>, vector<8x32xf32> -> vector<16x32xf32>
    %13 = tpu.concatenate %7, %12 in 0 : vector<16x32xf32>, vector<16x32xf32> -> vector<32x32xf32>
    %c0_5 = arith.constant 0 : index
    %c0_6 = arith.constant 0 : index
    %14 = vector.load %arg3[%c0_5, %c0_6] : memref<32x96xf32, #tpu.memory_space<vmem>>, vector<32x96xf32>
    %cst = arith.constant dense<0.000000e+00> : vector<32x96xf32>
    %15 = tpu.matmul %13, %14, %cst {dimension_numbers = #tpu.dot_dimension_numbers<[1], [0], [0], [1], [0, 0, 1, 1], [], []>} : vector<32x32xf32>, vector<32x96xf32>, vector<32x96xf32> -> vector<32x96xf32>
    %c0_7 = arith.constant 0 : index
    %c0_8 = arith.constant 0 : index
    %16 = vector.load %arg4[%c0_7, %c0_8] : memref<1x96xf32, #tpu.memory_space<vmem>>, vector<1x96xf32>
    %17 = vector.broadcast %16 : vector<1x96xf32> to vector<32x96xf32>
    %18 = arith.addf %15, %17 : vector<32x96xf32>
    %19 = vector.extract_strided_slice %18 {offsets = [0, 0], sizes = [8, 8], strides = [1, 1]} : vector<32x96xf32> to vector<8x8xf32>
    %20 = vector.extract_strided_slice %18 {offsets = [0, 32], sizes = [8, 8], strides = [1, 1]} : vector<32x96xf32> to vector<8x8xf32>
    %21 = vector.extract_strided_slice %18 {offsets = [16, 64], sizes = [8, 8], strides = [1, 1]} : vector<32x96xf32> to vector<8x8xf32>
    %22 = tpu.transpose %20, [1, 0] : vector<8x8xf32> -> vector<8x8xf32>
    %cst_9 = arith.constant dense<0.000000e+00> : vector<8x8xf32>
    %23 = tpu.matmul %19, %22, %cst_9 {dimension_numbers = #tpu.dot_dimension_numbers<[1], [0], [0], [1], [0, 0, 1, 1], [], []>} : vector<8x8xf32>, vector<8x8xf32>, vector<8x8xf32> -> vector<8x8xf32>
    %cst_10 = arith.constant 0.353553385 : f32
    %24 = vector.broadcast %cst_10 : f32 to vector<8x8xf32>
    %25 = arith.mulf %23, %24 : vector<8x8xf32>
    %cst_11 = arith.constant dense<0xFF800000> : vector<8xf32>
    %26 = vector.multi_reduction <maximumf>, %25, %cst_11 [1] : vector<8x8xf32> to vector<8xf32>
    %27 = vector.shape_cast %26 : vector<8xf32> to vector<8x1xf32>
    %28 = vector.broadcast %27 : vector<8x1xf32> to vector<8x8xf32>
    %29 = arith.subf %25, %28 : vector<8x8xf32>
    %30 = math.exp %29 : vector<8x8xf32>
    %cst_12 = arith.constant dense<0.000000e+00> : vector<8xf32>
    %31 = vector.multi_reduction <add>, %30, %cst_12 [1] : vector<8x8xf32> to vector<8xf32>
    %32 = vector.shape_cast %31 : vector<8xf32> to vector<8x1xf32>
    %33 = tpu.reciprocal %32 : vector<8x1xf32> -> vector<8x1xf32>
    %34 = vector.broadcast %33 : vector<8x1xf32> to vector<8x8xf32>
    %35 = arith.mulf %30, %34 : vector<8x8xf32>
    %cst_13 = arith.constant dense<0.000000e+00> : vector<8x8xf32>
    %36 = tpu.matmul %35, %21, %cst_13 {dimension_numbers = #tpu.dot_dimension_numbers<[1], [0], [0], [1], [0, 0, 1, 1], [], []>} : vector<8x8xf32>, vector<8x8xf32>, vector<8x8xf32> -> vector<8x8xf32>
    %c0_14 = arith.constant 0 : index
    %c0_15 = arith.constant 0 : index
    %37 = vector.load %arg8[%c0_14, %c0_15] : memref<16x32xf32, #tpu.memory_space<vmem>>, vector<8x8xf32>
    tpu.vector_store %arg8[%c0_14, %c0_15], %36 {strides = array<i32>} : memref<16x32xf32, #tpu.memory_space<vmem>>, vector<8x8xf32>,
    %38 = vector.extract_strided_slice %18 {offsets = [0, 8], sizes = [8, 8], strides = [1, 1]} : vector<32x96xf32> to vector<8x8xf32>
    %39 = vector.extract_strided_slice %18 {offsets = [0, 40], sizes = [8, 8], strides = [1, 1]} : vector<32x96xf32> to vector<8x8xf32>
    %40 = vector.extract_strided_slice %18 {offsets = [16, 72], sizes = [8, 8], strides = [1, 1]} : vector<32x96xf32> to vector<8x8xf32>
    %41 = tpu.transpose %39, [1, 0] : vector<8x8xf32> -> vector<8x8xf32>
    %cst_16 = arith.constant dense<0.000000e+00> : vector<8x8xf32>
    %42 = tpu.matmul %38, %41, %cst_16 {dimension_numbers = #tpu.dot_dimension_numbers<[1], [0], [0], [1], [0, 0, 1, 1], [], []>} : vector<8x8xf32>, vector<8x8xf32>, vector<8x8xf32> -> vector<8x8xf32>
    %cst_17 = arith.constant 0.353553385 : f32
    %43 = vector.broadcast %cst_17 : f32 to vector<8x8xf32>
    %44 = arith.mulf %42, %43 : vector<8x8xf32>
    %cst_18 = arith.constant dense<0xFF800000> : vector<8xf32>
    %45 = vector.multi_reduction <maximumf>, %44, %cst_18 [1] : vector<8x8xf32> to vector<8xf32>
    %46 = vector.shape_cast %45 : vector<8xf32> to vector<8x1xf32>
    %47 = vector.broadcast %46 : vector<8x1xf32> to vector<8x8xf32>
    %48 = arith.subf %44, %47 : vector<8x8xf32>
    %49 = math.exp %48 : vector<8x8xf32>
    %cst_19 = arith.constant dense<0.000000e+00> : vector<8xf32>
    %50 = vector.multi_reduction <add>, %49, %cst_19 [1] : vector<8x8xf32> to vector<8xf32>
    %51 = vector.shape_cast %50 : vector<8xf32> to vector<8x1xf32>
    %52 = tpu.reciprocal %51 : vector<8x1xf32> -> vector<8x1xf32>
    %53 = vector.broadcast %52 : vector<8x1xf32> to vector<8x8xf32>
    %54 = arith.mulf %49, %53 : vector<8x8xf32>
    %cst_20 = arith.constant dense<0.000000e+00> : vector<8x8xf32>
    %55 = tpu.matmul %54, %40, %cst_20 {dimension_numbers = #tpu.dot_dimension_numbers<[1], [0], [0], [1], [0, 0, 1, 1], [], []>} : vector<8x8xf32>, vector<8x8xf32>, vector<8x8xf32> -> vector<8x8xf32>
    %c0_21 = arith.constant 0 : index
    %c8 = arith.constant 8 : index
    %56 = vector.load %arg8[%c0_21, %c8] : memref<16x32xf32, #tpu.memory_space<vmem>>, vector<8x8xf32>
    tpu.vector_store %arg8[%c0_21, %c8], %55 {strides = array<i32>} : memref<16x32xf32, #tpu.memory_space<vmem>>, vector<8x8xf32>,
    %57 = vector.extract_strided_slice %18 {offsets = [0, 16], sizes = [8, 8], strides = [1, 1]} : vector<32x96xf32> to vector<8x8xf32>
    %58 = vector.extract_strided_slice %18 {offsets = [0, 48], sizes = [8, 8], strides = [1, 1]} : vector<32x96xf32> to vector<8x8xf32>
    %59 = vector.extract_strided_slice %18 {offsets = [16, 80], sizes = [8, 8], strides = [1, 1]} : vector<32x96xf32> to vector<8x8xf32>
    %60 = tpu.transpose %58, [1, 0] : vector<8x8xf32> -> vector<8x8xf32>
    %cst_22 = arith.constant dense<0.000000e+00> : vector<8x8xf32>
    %61 = tpu.matmul %57, %60, %cst_22 {dimension_numbers = #tpu.dot_dimension_numbers<[1], [0], [0], [1], [0, 0, 1, 1], [], []>} : vector<8x8xf32>, vector<8x8xf32>, vector<8x8xf32> -> vector<8x8xf32>
    %cst_23 = arith.constant 0.353553385 : f32
    %62 = vector.broadcast %cst_23 : f32 to vector<8x8xf32>
    %63 = arith.mulf %61, %62 : vector<8x8xf32>
    %cst_24 = arith.constant dense<0xFF800000> : vector<8xf32>
    %64 = vector.multi_reduction <maximumf>, %63, %cst_24 [1] : vector<8x8xf32> to vector<8xf32>
    %65 = vector.shape_cast %64 : vector<8xf32> to vector<8x1xf32>
    %66 = vector.broadcast %65 : vector<8x1xf32> to vector<8x8xf32>
    %67 = arith.subf %63, %66 : vector<8x8xf32>
    %68 = math.exp %67 : vector<8x8xf32>
    %cst_25 = arith.constant dense<0.000000e+00> : vector<8xf32>
    %69 = vector.multi_reduction <add>, %68, %cst_25 [1] : vector<8x8xf32> to vector<8xf32>
    %70 = vector.shape_cast %69 : vector<8xf32> to vector<8x1xf32>
    %71 = tpu.reciprocal %70 : vector<8x1xf32> -> vector<8x1xf32>
    %72 = vector.broadcast %71 : vector<8x1xf32> to vector<8x8xf32>
    %73 = arith.mulf %68, %72 : vector<8x8xf32>
    %cst_26 = arith.constant dense<0.000000e+00> : vector<8x8xf32>
    %74 = tpu.matmul %73, %59, %cst_26 {dimension_numbers = #tpu.dot_dimension_numbers<[1], [0], [0], [1], [0, 0, 1, 1], [], []>} : vector<8x8xf32>, vector<8x8xf32>, vector<8x8xf32> -> vector<8x8xf32>
    %c0_27 = arith.constant 0 : index
    %c16 = arith.constant 16 : index
    %75 = vector.load %arg8[%c0_27, %c16] : memref<16x32xf32, #tpu.memory_space<vmem>>, vector<8x8xf32>
    tpu.vector_store %arg8[%c0_27, %c16], %74 {strides = array<i32>} : memref<16x32xf32, #tpu.memory_space<vmem>>, vector<8x8xf32>,
    %76 = vector.extract_strided_slice %18 {offsets = [0, 24], sizes = [8, 8], strides = [1, 1]} : vector<32x96xf32> to vector<8x8xf32>
    %77 = vector.extract_strided_slice %18 {offsets = [0, 56], sizes = [8, 8], strides = [1, 1]} : vector<32x96xf32> to vector<8x8xf32>
    %78 = vector.extract_strided_slice %18 {offsets = [16, 88], sizes = [8, 8], strides = [1, 1]} : vector<32x96xf32> to vector<8x8xf32>
    %79 = tpu.transpose %77, [1, 0] : vector<8x8xf32> -> vector<8x8xf32>
    %cst_28 = arith.constant dense<0.000000e+00> : vector<8x8xf32>
    %80 = tpu.matmul %76, %79, %cst_28 {dimension_numbers = #tpu.dot_dimension_numbers<[1], [0], [0], [1], [0, 0, 1, 1], [], []>} : vector<8x8xf32>, vector<8x8xf32>, vector<8x8xf32> -> vector<8x8xf32>
    %cst_29 = arith.constant 0.353553385 : f32
    %81 = vector.broadcast %cst_29 : f32 to vector<8x8xf32>
    %82 = arith.mulf %80, %81 : vector<8x8xf32>
    %cst_30 = arith.constant dense<0xFF800000> : vector<8xf32>
    %83 = vector.multi_reduction <maximumf>, %82, %cst_30 [1] : vector<8x8xf32> to vector<8xf32>
    %84 = vector.shape_cast %83 : vector<8xf32> to vector<8x1xf32>
    %85 = vector.broadcast %84 : vector<8x1xf32> to vector<8x8xf32>
    %86 = arith.subf %82, %85 : vector<8x8xf32>
    %87 = math.exp %86 : vector<8x8xf32>
    %cst_31 = arith.constant dense<0.000000e+00> : vector<8xf32>
    %88 = vector.multi_reduction <add>, %87, %cst_31 [1] : vector<8x8xf32> to vector<8xf32>
    %89 = vector.shape_cast %88 : vector<8xf32> to vector<8x1xf32>
    %90 = tpu.reciprocal %89 : vector<8x1xf32> -> vector<8x1xf32>
    %91 = vector.broadcast %90 : vector<8x1xf32> to vector<8x8xf32>
    %92 = arith.mulf %87, %91 : vector<8x8xf32>
    %cst_32 = arith.constant dense<0.000000e+00> : vector<8x8xf32>
    %93 = tpu.matmul %92, %78, %cst_32 {dimension_numbers = #tpu.dot_dimension_numbers<[1], [0], [0], [1], [0, 0, 1, 1], [], []>} : vector<8x8xf32>, vector<8x8xf32>, vector<8x8xf32> -> vector<8x8xf32>
    %c0_33 = arith.constant 0 : index
    %c24 = arith.constant 24 : index
    %94 = vector.load %arg8[%c0_33, %c24] : memref<16x32xf32, #tpu.memory_space<vmem>>, vector<8x8xf32>
    tpu.vector_store %arg8[%c0_33, %c24], %93 {strides = array<i32>} : memref<16x32xf32, #tpu.memory_space<vmem>>, vector<8x8xf32>,
    %95 = vector.extract_strided_slice %18 {offsets = [8, 0], sizes = [8, 8], strides = [1, 1]} : vector<32x96xf32> to vector<8x8xf32>
    %96 = vector.extract_strided_slice %18 {offsets = [8, 32], sizes = [8, 8], strides = [1, 1]} : vector<32x96xf32> to vector<8x8xf32>
    %97 = vector.extract_strided_slice %18 {offsets = [24, 64], sizes = [8, 8], strides = [1, 1]} : vector<32x96xf32> to vector<8x8xf32>
    %98 = tpu.transpose %96, [1, 0] : vector<8x8xf32> -> vector<8x8xf32>
    %cst_34 = arith.constant dense<0.000000e+00> : vector<8x8xf32>
    %99 = tpu.matmul %95, %98, %cst_34 {dimension_numbers = #tpu.dot_dimension_numbers<[1], [0], [0], [1], [0, 0, 1, 1], [], []>} : vector<8x8xf32>, vector<8x8xf32>, vector<8x8xf32> -> vector<8x8xf32>
    %cst_35 = arith.constant 0.353553385 : f32
    %100 = vector.broadcast %cst_35 : f32 to vector<8x8xf32>
    %101 = arith.mulf %99, %100 : vector<8x8xf32>
    %cst_36 = arith.constant dense<0xFF800000> : vector<8xf32>
    %102 = vector.multi_reduction <maximumf>, %101, %cst_36 [1] : vector<8x8xf32> to vector<8xf32>
    %103 = vector.shape_cast %102 : vector<8xf32> to vector<8x1xf32>
    %104 = vector.broadcast %103 : vector<8x1xf32> to vector<8x8xf32>
    %105 = arith.subf %101, %104 : vector<8x8xf32>
    %106 = math.exp %105 : vector<8x8xf32>
    %cst_37 = arith.constant dense<0.000000e+00> : vector<8xf32>
    %107 = vector.multi_reduction <add>, %106, %cst_37 [1] : vector<8x8xf32> to vector<8xf32>
    %108 = vector.shape_cast %107 : vector<8xf32> to vector<8x1xf32>
    %109 = tpu.reciprocal %108 : vector<8x1xf32> -> vector<8x1xf32>
    %110 = vector.broadcast %109 : vector<8x1xf32> to vector<8x8xf32>
    %111 = arith.mulf %106, %110 : vector<8x8xf32>
    %cst_38 = arith.constant dense<0.000000e+00> : vector<8x8xf32>
    %112 = tpu.matmul %111, %97, %cst_38 {dimension_numbers = #tpu.dot_dimension_numbers<[1], [0], [0], [1], [0, 0, 1, 1], [], []>} : vector<8x8xf32>, vector<8x8xf32>, vector<8x8xf32> -> vector<8x8xf32>
    %c8_39 = arith.constant 8 : index
    %c0_40 = arith.constant 0 : index
    %113 = vector.load %arg8[%c8_39, %c0_40] : memref<16x32xf32, #tpu.memory_space<vmem>>, vector<8x8xf32>
    tpu.vector_store %arg8[%c8_39, %c0_40], %112 {strides = array<i32>} : memref<16x32xf32, #tpu.memory_space<vmem>>, vector<8x8xf32>,
    %114 = vector.extract_strided_slice %18 {offsets = [8, 8], sizes = [8, 8], strides = [1, 1]} : vector<32x96xf32> to vector<8x8xf32>
    %115 = vector.extract_strided_slice %18 {offsets = [8, 40], sizes = [8, 8], strides = [1, 1]} : vector<32x96xf32> to vector<8x8xf32>
    %116 = vector.extract_strided_slice %18 {offsets = [24, 72], sizes = [8, 8], strides = [1, 1]} : vector<32x96xf32> to vector<8x8xf32>
    %117 = tpu.transpose %115, [1, 0] : vector<8x8xf32> -> vector<8x8xf32>
    %cst_41 = arith.constant dense<0.000000e+00> : vector<8x8xf32>
    %118 = tpu.matmul %114, %117, %cst_41 {dimension_numbers = #tpu.dot_dimension_numbers<[1], [0], [0], [1], [0, 0, 1, 1], [], []>} : vector<8x8xf32>, vector<8x8xf32>, vector<8x8xf32> -> vector<8x8xf32>
    %cst_42 = arith.constant 0.353553385 : f32
    %119 = vector.broadcast %cst_42 : f32 to vector<8x8xf32>
    %120 = arith.mulf %118, %119 : vector<8x8xf32>
    %cst_43 = arith.constant dense<0xFF800000> : vector<8xf32>
    %121 = vector.multi_reduction <maximumf>, %120, %cst_43 [1] : vector<8x8xf32> to vector<8xf32>
    %122 = vector.shape_cast %121 : vector<8xf32> to vector<8x1xf32>
    %123 = vector.broadcast %122 : vector<8x1xf32> to vector<8x8xf32>
    %124 = arith.subf %120, %123 : vector<8x8xf32>
    %125 = math.exp %124 : vector<8x8xf32>
    %cst_44 = arith.constant dense<0.000000e+00> : vector<8xf32>
    %126 = vector.multi_reduction <add>, %125, %cst_44 [1] : vector<8x8xf32> to vector<8xf32>
    %127 = vector.shape_cast %126 : vector<8xf32> to vector<8x1xf32>
    %128 = tpu.reciprocal %127 : vector<8x1xf32> -> vector<8x1xf32>
    %129 = vector.broadcast %128 : vector<8x1xf32> to vector<8x8xf32>
    %130 = arith.mulf %125, %129 : vector<8x8xf32>
    %cst_45 = arith.constant dense<0.000000e+00> : vector<8x8xf32>
    %131 = tpu.matmul %130, %116, %cst_45 {dimension_numbers = #tpu.dot_dimension_numbers<[1], [0], [0], [1], [0, 0, 1, 1], [], []>} : vector<8x8xf32>, vector<8x8xf32>, vector<8x8xf32> -> vector<8x8xf32>
    %c8_46 = arith.constant 8 : index
    %c8_47 = arith.constant 8 : index
    %132 = vector.load %arg8[%c8_46, %c8_47] : memref<16x32xf32, #tpu.memory_space<vmem>>, vector<8x8xf32>
    tpu.vector_store %arg8[%c8_46, %c8_47], %131 {strides = array<i32>} : memref<16x32xf32, #tpu.memory_space<vmem>>, vector<8x8xf32>,
    %133 = vector.extract_strided_slice %18 {offsets = [8, 16], sizes = [8, 8], strides = [1, 1]} : vector<32x96xf32> to vector<8x8xf32>
    %134 = vector.extract_strided_slice %18 {offsets = [8, 48], sizes = [8, 8], strides = [1, 1]} : vector<32x96xf32> to vector<8x8xf32>
    %135 = vector.extract_strided_slice %18 {offsets = [24, 80], sizes = [8, 8], strides = [1, 1]} : vector<32x96xf32> to vector<8x8xf32>
    %136 = tpu.transpose %134, [1, 0] : vector<8x8xf32> -> vector<8x8xf32>
    %cst_48 = arith.constant dense<0.000000e+00> : vector<8x8xf32>
    %137 = tpu.matmul %133, %136, %cst_48 {dimension_numbers = #tpu.dot_dimension_numbers<[1], [0], [0], [1], [0, 0, 1, 1], [], []>} : vector<8x8xf32>, vector<8x8xf32>, vector<8x8xf32> -> vector<8x8xf32>
    %cst_49 = arith.constant 0.353553385 : f32
    %138 = vector.broadcast %cst_49 : f32 to vector<8x8xf32>
    %139 = arith.mulf %137, %138 : vector<8x8xf32>
    %cst_50 = arith.constant dense<0xFF800000> : vector<8xf32>
    %140 = vector.multi_reduction <maximumf>, %139, %cst_50 [1] : vector<8x8xf32> to vector<8xf32>
    %141 = vector.shape_cast %140 : vector<8xf32> to vector<8x1xf32>
    %142 = vector.broadcast %141 : vector<8x1xf32> to vector<8x8xf32>
    %143 = arith.subf %139, %142 : vector<8x8xf32>
    %144 = math.exp %143 : vector<8x8xf32>
    %cst_51 = arith.constant dense<0.000000e+00> : vector<8xf32>
    %145 = vector.multi_reduction <add>, %144, %cst_51 [1] : vector<8x8xf32> to vector<8xf32>
    %146 = vector.shape_cast %145 : vector<8xf32> to vector<8x1xf32>
    %147 = tpu.reciprocal %146 : vector<8x1xf32> -> vector<8x1xf32>
    %148 = vector.broadcast %147 : vector<8x1xf32> to vector<8x8xf32>
    %149 = arith.mulf %144, %148 : vector<8x8xf32>
    %cst_52 = arith.constant dense<0.000000e+00> : vector<8x8xf32>
    %150 = tpu.matmul %149, %135, %cst_52 {dimension_numbers = #tpu.dot_dimension_numbers<[1], [0], [0], [1], [0, 0, 1, 1], [], []>} : vector<8x8xf32>, vector<8x8xf32>, vector<8x8xf32> -> vector<8x8xf32>
    %c8_53 = arith.constant 8 : index
    %c16_54 = arith.constant 16 : index
    %151 = vector.load %arg8[%c8_53, %c16_54] : memref<16x32xf32, #tpu.memory_space<vmem>>, vector<8x8xf32>
    tpu.vector_store %arg8[%c8_53, %c16_54], %150 {strides = array<i32>} : memref<16x32xf32, #tpu.memory_space<vmem>>, vector<8x8xf32>,
    %152 = vector.extract_strided_slice %18 {offsets = [8, 24], sizes = [8, 8], strides = [1, 1]} : vector<32x96xf32> to vector<8x8xf32>
    %153 = vector.extract_strided_slice %18 {offsets = [8, 56], sizes = [8, 8], strides = [1, 1]} : vector<32x96xf32> to vector<8x8xf32>
    %154 = vector.extract_strided_slice %18 {offsets = [24, 88], sizes = [8, 8], strides = [1, 1]} : vector<32x96xf32> to vector<8x8xf32>
    %155 = tpu.transpose %153, [1, 0] : vector<8x8xf32> -> vector<8x8xf32>
    %cst_55 = arith.constant dense<0.000000e+00> : vector<8x8xf32>
    %156 = tpu.matmul %152, %155, %cst_55 {dimension_numbers = #tpu.dot_dimension_numbers<[1], [0], [0], [1], [0, 0, 1, 1], [], []>} : vector<8x8xf32>, vector<8x8xf32>, vector<8x8xf32> -> vector<8x8xf32>
    %cst_56 = arith.constant 0.353553385 : f32
    %157 = vector.broadcast %cst_56 : f32 to vector<8x8xf32>
    %158 = arith.mulf %156, %157 : vector<8x8xf32>
    %cst_57 = arith.constant dense<0xFF800000> : vector<8xf32>
    %159 = vector.multi_reduction <maximumf>, %158, %cst_57 [1] : vector<8x8xf32> to vector<8xf32>
    %160 = vector.shape_cast %159 : vector<8xf32> to vector<8x1xf32>
    %161 = vector.broadcast %160 : vector<8x1xf32> to vector<8x8xf32>
    %162 = arith.subf %158, %161 : vector<8x8xf32>
    %163 = math.exp %162 : vector<8x8xf32>
    %cst_58 = arith.constant dense<0.000000e+00> : vector<8xf32>
    %164 = vector.multi_reduction <add>, %163, %cst_58 [1] : vector<8x8xf32> to vector<8xf32>
    %165 = vector.shape_cast %164 : vector<8xf32> to vector<8x1xf32>
    %166 = tpu.reciprocal %165 : vector<8x1xf32> -> vector<8x1xf32>
    %167 = vector.broadcast %166 : vector<8x1xf32> to vector<8x8xf32>
    %168 = arith.mulf %163, %167 : vector<8x8xf32>
    %cst_59 = arith.constant dense<0.000000e+00> : vector<8x8xf32>
    %169 = tpu.matmul %168, %154, %cst_59 {dimension_numbers = #tpu.dot_dimension_numbers<[1], [0], [0], [1], [0, 0, 1, 1], [], []>} : vector<8x8xf32>, vector<8x8xf32>, vector<8x8xf32> -> vector<8x8xf32>
    %c8_60 = arith.constant 8 : index
    %c24_61 = arith.constant 24 : index
    %170 = vector.load %arg8[%c8_60, %c24_61] : memref<16x32xf32, #tpu.memory_space<vmem>>, vector<8x8xf32>
    tpu.vector_store %arg8[%c8_60, %c24_61], %169 {strides = array<i32>} : memref<16x32xf32, #tpu.memory_space<vmem>>, vector<8x8xf32>,
    %c0_62 = arith.constant 0 : index
    %c0_63 = arith.constant 0 : index
    %171 = vector.load %arg6[%c0_62, %c0_63] : memref<3x32xf32, #tpu.memory_space<vmem>>, vector<3x32xf32>
    %c0_64 = arith.constant 0 : index
    %c0_65 = arith.constant 0 : index
    %172 = vector.load %arg8[%c0_64, %c0_65] : memref<16x32xf32, #tpu.memory_space<vmem>>, vector<16x32xf32>
    %c0_66 = arith.constant 0 : index
    %c0_67 = arith.constant 0 : index
    %173 = vector.load %arg5[%c0_66, %c0_67] : memref<32x32xf32, #tpu.memory_space<vmem>>, vector<32x32xf32>
    %cst_68 = arith.constant dense<0.000000e+00> : vector<16x32xf32>
    %174 = tpu.matmul %172, %173, %cst_68 {dimension_numbers = #tpu.dot_dimension_numbers<[1], [0], [0], [1], [0, 0, 1, 1], [], []>} : vector<16x32xf32>, vector<32x32xf32>, vector<16x32xf32> -> vector<16x32xf32>
    %175 = vector.extract_strided_slice %171 {offsets = [0, 0], sizes = [1, 32], strides = [1, 1]} : vector<3x32xf32> to vector<1x32xf32>
    %176 = vector.broadcast %175 : vector<1x32xf32> to vector<16x32xf32>
    %177 = arith.addf %174, %176 : vector<16x32xf32>
    %178 = arith.addf %12, %177 : vector<16x32xf32>
    %cst_69 = arith.constant dense<0.000000e+00> : vector<16xf32>
    %179 = vector.multi_reduction <add>, %178, %cst_69 [1] : vector<16x32xf32> to vector<16xf32>
    %180 = vector.shape_cast %179 : vector<16xf32> to vector<16x1xf32>
    %cst_70 = arith.constant 3.200000e+01 : f32
    %181 = vector.broadcast %cst_70 : f32 to vector<16x1xf32>
    %182 = arith.divf %180, %181 : vector<16x1xf32>
    %183 = vector.broadcast %182 : vector<16x1xf32> to vector<16x32xf32>
    %184 = arith.subf %178, %183 : vector<16x32xf32>
    %185 = arith.mulf %184, %184 : vector<16x32xf32>
    %cst_71 = arith.constant dense<0.000000e+00> : vector<16xf32>
    %186 = vector.multi_reduction <add>, %185, %cst_71 [1] : vector<16x32xf32> to vector<16xf32>
    %187 = vector.shape_cast %186 : vector<16xf32> to vector<16x1xf32>
    %cst_72 = arith.constant 3.200000e+01 : f32
    %188 = vector.broadcast %cst_72 : f32 to vector<16x1xf32>
    %189 = arith.divf %187, %188 : vector<16x1xf32>
    %190 = vector.broadcast %182 : vector<16x1xf32> to vector<16x32xf32>
    %191 = arith.subf %178, %190 : vector<16x32xf32>
    %cst_73 = arith.constant 9.99999974E-6 : f32
    %192 = vector.broadcast %cst_73 : f32 to vector<16x1xf32>
    %193 = arith.addf %189, %192 : vector<16x1xf32>
    %194 = math.rsqrt %193 : vector<16x1xf32>
    %195 = vector.broadcast %194 : vector<16x1xf32> to vector<16x32xf32>
    %196 = arith.mulf %191, %195 : vector<16x32xf32>
    %197 = vector.extract_strided_slice %171 {offsets = [1, 0], sizes = [1, 32], strides = [1, 1]} : vector<3x32xf32> to vector<1x32xf32>
    %198 = vector.broadcast %197 : vector<1x32xf32> to vector<16x32xf32>
    %199 = arith.mulf %196, %198 : vector<16x32xf32>
    %200 = vector.extract_strided_slice %171 {offsets = [2, 0], sizes = [1, 32], strides = [1, 1]} : vector<3x32xf32> to vector<1x32xf32>
    %201 = vector.broadcast %200 : vector<1x32xf32> to vector<16x32xf32>
    %202 = arith.addf %199, %201 : vector<16x32xf32>
    %203 = vector.extract_strided_slice %202 {offsets = [0, 0], sizes = [8, 32], strides = [1, 1]} : vector<16x32xf32> to vector<8x32xf32>
    %204 = vector.shape_cast %203 : vector<8x32xf32> to vector<8x1x32xf32>
    %205 = vector.extract_strided_slice %202 {offsets = [8, 0], sizes = [8, 32], strides = [1, 1]} : vector<16x32xf32> to vector<8x32xf32>
    %206 = vector.shape_cast %205 : vector<8x32xf32> to vector<8x1x32xf32>
    %207 = tpu.concatenate %204, %206 in 1 : vector<8x1x32xf32>, vector<8x1x32xf32> -> vector<8x2x32xf32>
    %c0_74 = arith.constant 0 : index
    %c0_75 = arith.constant 0 : index
    %c0_76 = arith.constant 0 : index
    %208 = vector.load %arg7[%c0_74, %c0_75, %c0_76] : memref<8x2x32xf32, #tpu.memory_space<vmem>>, vector<8x2x32xf32>
    tpu.vector_store %arg7[%c0_74, %c0_75, %c0_76], %207 {strides = array<i32>} : memref<8x2x32xf32, #tpu.memory_space<vmem>>, vector<8x2x32xf32>,
    return
  }
  func.func @transform_0(%arg0: i32) -> (i32, i32, i32) {
    %c0_i32 = arith.constant 0 : i32
    %c0_i32_0 = arith.constant 0 : i32
    %c0_i32_1 = arith.constant 0 : i32
    %c0_i32_2 = arith.constant 0 : i32
    return %c0_i32, %c0_i32_0, %c0_i32_1 : i32, i32, i32
  }
  func.func @transform_1(%arg0: i32) -> (i32, i32, i32) {
    %c0_i32 = arith.constant 0 : i32
    %c0_i32_0 = arith.constant 0 : i32
    %c0_i32_1 = arith.constant 0 : i32
    %c0_i32_2 = arith.constant 0 : i32
    return %c0_i32, %c0_i32_0, %c0_i32_1 : i32, i32, i32
  }
  func.func @transform_2(%arg0: i32) -> (i32, i32) {
    %c0_i32 = arith.constant 0 : i32
    %c0_i32_0 = arith.constant 0 : i32
    %c0_i32_1 = arith.constant 0 : i32
    return %c0_i32, %c0_i32_0 : i32, i32
  }
  func.func @transform_3(%arg0: i32) -> (i32, i32) {
    %c0_i32 = arith.constant 0 : i32
    %c0_i32_0 = arith.constant 0 : i32
    %c0_i32_1 = arith.constant 0 : i32
    return %c0_i32, %c0_i32_0 : i32, i32
  }
  func.func @transform_4(%arg0: i32) -> (i32, i32) {
    %c0_i32 = arith.constant 0 : i32
    %c0_i32_0 = arith.constant 0 : i32
    %c0_i32_1 = arith.constant 0 : i32
    return %c0_i32, %c0_i32_0 : i32, i32
  }
  func.func @transform_5(%arg0: i32) -> (i32, i32) {
    %c0_i32 = arith.constant 0 : i32
    %c0_i32_0 = arith.constant 0 : i32
    %c0_i32_1 = arith.constant 0 : i32
    return %c0_i32, %c0_i32_0 : i32, i32
  }
  func.func @transform_6(%arg0: i32) -> (i32, i32, i32) {
    %c0_i32 = arith.constant 0 : i32
    %c0_i32_0 = arith.constant 0 : i32
    %c0_i32_1 = arith.constant 0 : i32
    %c0_i32_2 = arith.constant 0 : i32
    return %c0_i32, %c0_i32_0, %c0_i32_1 : i32, i32, i32
  }
}

</mosaic_0001>

<llo_original>
// kernel: tpu_custom_call.1
$region0: #{tpu_custom_call.1}
  #allocation0 [shape = 'u32[]', space=smem, size = 0x4, offset = 0x4, fixed_abs, tag = 'smem constant byte address 0x4 - core index']
  #allocation1 [shape = 'u32[144,128]{1,0:T(1,128)}', space=vmem, size = 0x12000, scoped, tag = 'internal scratch']
  #allocation2 [shape = 'f32[16,32]{1,0:T(8,128)}', space=vmem, size = 0x2000, scoped, tag = 'scratch operand']
  %s0 = inlined_call_operand.hbm [shape: f32[8,2,32], index: 0, kind: input, shape index: {}]
  %s1 = inlined_call_operand.hbm [shape: f32[8,2,32], index: 1, kind: input, shape index: {}]
  %s2 = inlined_call_operand.hbm [shape: f32[32,96], index: 2, kind: input, shape index: {}]
  %s3 = inlined_call_operand.vmem [shape: f32[1,96], index: 3, kind: input, shape index: {}]
  %s4 = inlined_call_operand.hbm [shape: f32[32,32], index: 4, kind: input, shape index: {}]
  %s5 = inlined_call_operand.vmem [shape: f32[3,32], index: 5, kind: input, shape index: {}]
  %s6 = inlined_call_operand.hbm [shape: f32[8,2,32], index: 6, kind: output, shape index: {}]
  %s7 = sld [smem:[#allocation0]]
  $region50: #{tpu_custom_call.1} parent=0
    _
  %s9 = ssub.s32 1, %s7
  %s10 = scalar_select 0, %s9, %s7
  $region1: #{tpu_custom_call.1} parent=0
    #allocation3 [shape = 'u8[8192]{0}', space=vmem, size = 0x2000, scoped, tag = 'input window, operand 0, single buffered']
    #allocation4 [shape = 's32[1]{0}', space=sflag, size = 0x4, scoped, tag = 'scoped memory for tpu_custom_call.1']
    #allocation5 [shape = 's32[1]{0}', space=sflag, size = 0x4, scoped, tag = 'scoped memory for tpu_custom_call.1']
    #allocation6 [shape = 'u8[8192]{0}', space=vmem, size = 0x2000, scoped, tag = 'input window, operand 1, single buffered']
    #allocation7 [shape = 's32[1]{0}', space=sflag, size = 0x4, scoped, tag = 'scoped memory for tpu_custom_call.1']
    #allocation8 [shape = 'u8[16384]{0}', space=vmem, size = 0x4000, scoped, tag = 'input window, operand 2, single buffered']
    #allocation9 [shape = 'u8[16384]{0}', space=vmem, size = 0x4000, scoped, tag = 'input window, operand 4, single buffered']
    #allocation10 [shape = 's32[1]{0}', space=sflag, size = 0x4, scoped, tag = 'scoped memory for tpu_custom_call.1']
    #allocation11 [shape = 'u8[8192]{0}', space=vmem, size = 0x2000, scoped, tag = 'output window, operand 0, single buffered']
    %11 = vsyncpa [#allocation4], 0
    %12 = vsyncpa [#allocation7], 0
    %13 = vsyncpa [#allocation10], 0
    %14 = vsyncpa [#allocation5], 0
    // Predicated region
    $region2: #{tpu_custom_call.1} parent=1 // pred_check
      _
    $region3: #{tpu_custom_call.1} parent=1 // pred_check_branch
      %16 = sbr.rel (0) target = $region5
    $region4: #{tpu_custom_call.1} parent=1 // pred_region
      %s18 = ssub.s32 256, 256
      %19 = vsyncadd [#allocation4], %s18
      %s20 = sshll.u32 [#allocation3], 4
      %s21 = int_to_ptr.vmem [resolvable:$true] %s20
      %26 = dma.hbm_to_vmem [thread:$0]  %s0, 256, %s21, [#allocation4], 32, 32, 2
    $region5: #{tpu_custom_call.1} parent=1 // pred_fallthru
      _
    // Predicated region
    $region6: #{tpu_custom_call.1} parent=1 // pred_check
      _
    $region7: #{tpu_custom_call.1} parent=1 // pred_check_branch
      %28 = sbr.rel (0) target = $region9
    $region8: #{tpu_custom_call.1} parent=1 // pred_region
      %s30 = ssub.s32 256, 256
      %31 = vsyncadd [#allocation7], %s30
      %s32 = sshll.u32 [#allocation6], 4
      %s33 = int_to_ptr.vmem [resolvable:$true] %s32
      %38 = dma.hbm_to_vmem [thread:$0]  %s1, 256, %s33, [#allocation7], 32, 32, 2
    $region9: #{tpu_custom_call.1} parent=1 // pred_fallthru
      _
    // Predicated region
    $region10: #{tpu_custom_call.1} parent=1 // pred_check
      _
    $region11: #{tpu_custom_call.1} parent=1 // pred_check_branch
      %40 = sbr.rel (0) target = $region13
    $region12: #{tpu_custom_call.1} parent=1 // pred_region
      %s42 = ssub.s32 512, 512
      %43 = vsyncadd [#allocation7], %s42
      %s44 = sshll.u32 [#allocation8], 4
      %s45 = int_to_ptr.vmem [resolvable:$true] %s44
      %50 = dma.hbm_to_vmem [thread:$0]  %s2, 512, %s45, [#allocation7], 128, 128, 8
    $region13: #{tpu_custom_call.1} parent=1 // pred_fallthru
      _
    // Predicated region
    $region14: #{tpu_custom_call.1} parent=1 // pred_check
      _
    $region15: #{tpu_custom_call.1} parent=1 // pred_check_branch
      %52 = sbr.rel (0) target = $region17
    $region16: #{tpu_custom_call.1} parent=1 // pred_region
      _
    $region17: #{tpu_custom_call.1} parent=1 // pred_fallthru
      _
    // Predicated region
    $region18: #{tpu_custom_call.1} parent=1 // pred_check
      _
    $region19: #{tpu_custom_call.1} parent=1 // pred_check_branch
      %54 = sbr.rel (0) target = $region21
    $region20: #{tpu_custom_call.1} parent=1 // pred_region
      %s56 = ssub.s32 512, 512
      %57 = vsyncadd [#allocation10], %s56
      %s58 = sshll.u32 [#allocation9], 4
      %s59 = int_to_ptr.vmem [resolvable:$true] %s58
      %64 = dma.hbm_to_vmem [thread:$0]  %s4, 512, %s59, [#allocation10], 128, 128, 8
    $region21: #{tpu_custom_call.1} parent=1 // pred_fallthru
      _
    // Predicated region
    $region22: #{tpu_custom_call.1} parent=1 // pred_check
      _
    $region23: #{tpu_custom_call.1} parent=1 // pred_check_branch
      %66 = sbr.rel (0) target = $region25
    $region24: #{tpu_custom_call.1} parent=1 // pred_region
      _
    $region25: #{tpu_custom_call.1} parent=1 // pred_fallthru
      _
    // Predicated region
    $region26: #{tpu_custom_call.1} parent=1 // pred_check
      _
    $region27: #{tpu_custom_call.1} parent=1 // pred_check_branch
      %68 = sbr.rel (0) target = $region29
    $region28: #{tpu_custom_call.1} parent=1 // pred_region
      %69 = dma.done [#allocation4], 256
    $region29: #{tpu_custom_call.1} parent=1 // pred_fallthru
      _
    // Predicated region
    $region30: #{tpu_custom_call.1} parent=1 // pred_check
      _
    $region31: #{tpu_custom_call.1} parent=1 // pred_check_branch
      %71 = sbr.rel (0) target = $region33
    $region32: #{tpu_custom_call.1} parent=1 // pred_region
      %72 = dma.done [#allocation7], 256
    $region33: #{tpu_custom_call.1} parent=1 // pred_fallthru
      _
    // Predicated region
    $region34: #{tpu_custom_call.1} parent=1 // pred_check
      _
    $region35: #{tpu_custom_call.1} parent=1 // pred_check_branch
      %74 = sbr.rel (0) target = $region37
    $region36: #{tpu_custom_call.1} parent=1 // pred_region
      %75 = dma.done [#allocation7], 512
    $region37: #{tpu_custom_call.1} parent=1 // pred_fallthru
      _
    // Predicated region
    $region38: #{tpu_custom_call.1} parent=1 // pred_check
      _
    $region39: #{tpu_custom_call.1} parent=1 // pred_check_branch
      %77 = sbr.rel (0) target = $region41
    $region40: #{tpu_custom_call.1} parent=1 // pred_region
      %78 = dma.done [#allocation10], 512
    $region41: #{tpu_custom_call.1} parent=1 // pred_fallthru
      _
    %v79 = vld [vmem:[#allocation3] sm:$0x3]
    %v80 = vld [vmem:[#allocation3 + $0x2] sm:$0x3]
    %v81 = vld [vmem:[#allocation3 + $0x4] sm:$0x3]
    %v82 = vld [vmem:[#allocation3 + $0x6] sm:$0x3]
    %v83 = vld [vmem:[#allocation3 + $0x8] sm:$0x3]
    %v84 = vld [vmem:[#allocation3 + $0xa] sm:$0x3]
    %v85 = vld [vmem:[#allocation3 + $0xc] sm:$0x3]
    %v86 = vld [vmem:[#allocation3 + $0xe] sm:$0x3]
    %v87 = vld [vmem:[#allocation6] sm:$0x3]
    %v88 = vld [vmem:[#allocation6 + $0x2] sm:$0x3]
    %v89 = vld [vmem:[#allocation6 + $0x4] sm:$0x3]
    %v90 = vld [vmem:[#allocation6 + $0x6] sm:$0x3]
    %v91 = vld [vmem:[#allocation6 + $0x8] sm:$0x3]
    %v92 = vld [vmem:[#allocation6 + $0xa] sm:$0x3]
    %v93 = vld [vmem:[#allocation6 + $0xc] sm:$0x3]
    %v94 = vld [vmem:[#allocation6 + $0xe] sm:$0x3]
    %v95 = vadd.f32 %v79, %v87
    %v96 = vadd.f32 %v80, %v88
    %v97 = vadd.f32 %v81, %v89
    %v98 = vadd.f32 %v82, %v90
    %v99 = vadd.f32 %v83, %v91
    %v100 = vadd.f32 %v84, %v92
    %v101 = vadd.f32 %v85, %v93
    %v102 = vadd.f32 %v86, %v94
    %v111 = vrot.slane %v96, 7
    %vm112 = vcmask 1041409
    %v113 = vsel %vm112, %v111, %v95
    %v114 = vrot.slane %v97, 6
    %vm115 = vcmask 1042434
    %v116 = vsel %vm115, %v114, %v113
    %v117 = vrot.slane %v98, 5
    %vm118 = vcmask 1043459
    %v119 = vsel %vm118, %v117, %v116
    %v120 = vrot.slane %v99, 4
    %vm121 = vcmask 1044484
    %v122 = vsel %vm121, %v120, %v119
    %v123 = vrot.slane %v100, 3
    %vm124 = vcmask 1045509
    %v125 = vsel %vm124, %v123, %v122
    %v126 = vrot.slane %v101, 2
    %vm127 = vcmask 1046534
    %v128 = vsel %vm127, %v126, %v125
    %v129 = vrot.slane %v102, 1
    %vm130 = vcmask 1047559
    %v131 = vsel %vm130, %v129, %v128
    %v132 = vrot.slane %v95, 1
    %v133 = vsel %vm112, %v96, %v132
    %v134 = vrot.slane %v97, 7
    %v135 = vsel %vm115, %v134, %v133
    %v136 = vrot.slane %v98, 6
    %v137 = vsel %vm118, %v136, %v135
    %v138 = vrot.slane %v99, 5
    %v139 = vsel %vm121, %v138, %v137
    %v140 = vrot.slane %v100, 4
    %v141 = vsel %vm124, %v140, %v139
    %v142 = vrot.slane %v101, 3
    %v143 = vsel %vm127, %v142, %v141
    %v144 = vrot.slane %v102, 2
    %v145 = vsel %vm130, %v144, %v143
    %v154 = vrot.slane %v80, 7
    %v155 = vsel %vm112, %v154, %v79
    %v156 = vrot.slane %v81, 6
    %v157 = vsel %vm115, %v156, %v155
    %v158 = vrot.slane %v82, 5
    %v159 = vsel %vm118, %v158, %v157
    %v160 = vrot.slane %v83, 4
    %v161 = vsel %vm121, %v160, %v159
    %v162 = vrot.slane %v84, 3
    %v163 = vsel %vm124, %v162, %v161
    %v164 = vrot.slane %v85, 2
    %v165 = vsel %vm127, %v164, %v163
    %v166 = vrot.slane %v86, 1
    %v167 = vsel %vm130, %v166, %v165
    %v169 = vrot.slane %v79, 1
    %v170 = vsel %vm112, %v80, %v169
    %v171 = vrot.slane %v81, 7
    %v172 = vsel %vm115, %v171, %v170
    %v173 = vrot.slane %v82, 6
    %v174 = vsel %vm118, %v173, %v172
    %v175 = vrot.slane %v83, 5
    %v176 = vsel %vm121, %v175, %v174
    %v177 = vrot.slane %v84, 4
    %v178 = vsel %vm124, %v177, %v176
    %v179 = vrot.slane %v85, 3
    %v180 = vsel %vm127, %v179, %v178
    %v181 = vrot.slane %v86, 2
    %v182 = vsel %vm130, %v181, %v180
    %v184 = vld [vmem:[#allocation8] sm:$0xff]
    %v185 = vld [vmem:[#allocation8 + $0x8] sm:$0xff]
    %v186 = vld [vmem:[#allocation8 + $0x10] sm:$0xff]
    %v187 = vld [vmem:[#allocation8 + $0x18] sm:$0xff]
    %v188 = vld [vmem:[%s3] sm:$0x1]
    %v190 = vlaneseq
    %v191 = vshrl.u32 %v190, 7
    %v192 = vsub.s32 0, %v191
    %v193 = vrot.slane %v188, %v192
    %vm195 = vcmask 261120
    %v196 = vsel %vm195, %v131, 0
    %v198 = vsel %vm195, %v145, 0
    %v200 = vsel %vm195, %v167, 0
    %v202 = vsel %vm195, %v182, 0
    %204 = vmatprep.subr.mxu0 0.0
    %205 = vmatpush1.msra.mxu0 %v184
    %206 = vmatprep.subr.mxu0 0.0
    %207 = vmatpush1.msra.mxu0 %v185
    %208 = vmatprep.subr.mxu0 0.0
    %209 = vmatpush1.msra.mxu0 %v186
    %210 = vmatprep.subr.mxu0 0.0
    %211 = vmatpush1.msra.mxu0 %v187
    %212 = vmatprep.subr.mxu0 0.0
    %213 = vmatpush1.msra.mxu0 0.0
    %214 = vmatprep.subr.mxu0 0.0
    %215 = vmatpush1.msra.mxu0 0.0
    %216 = vmatprep.subr.mxu0 0.0
    %217 = vmatpush1.msra.mxu0 0.0
    %218 = vmatprep.subr.mxu0 0.0
    %219 = vmatpush1.msra.mxu0 0.0
    %220 = vmatprep.subr.mxu0 0.0
    %221 = vmatpush1.msra.mxu0 0.0
    %222 = vmatprep.subr.mxu0 0.0
    %223 = vmatpush1.msra.mxu0 0.0
    %224 = vmatprep.subr.mxu0 0.0
    %225 = vmatpush1.msra.mxu0 0.0
    %226 = vmatprep.subr.mxu0 0.0
    %227 = vmatpush1.msra.mxu0 0.0
    %228 = vmatprep.subr.mxu0 0.0
    %229 = vmatpush1.msra.mxu0 0.0
    %230 = vmatprep.subr.mxu0 0.0
    %231 = vmatpush1.msra.mxu0 0.0
    %232 = vmatprep.subr.mxu0 0.0
    %233 = vmatpush1.msra.mxu0 0.0
    %234 = vmatprep.subr.mxu0 0.0
    %235 = vmatpush1.msra.mxu0 0.0
    %236 = vmatprep.subr.mxu0 0.0
    %237 = vmatpush1.msra.mxu0 0.0
    %238 = vmatprep.subr.mxu0 0.0
    %239 = vmatpush1.msra.mxu0 0.0
    %240 = vmatprep.subr.mxu0 0.0
    %241 = vmatpush1.msra.mxu0 0.0
    %242 = vmatprep.subr.mxu0 0.0
    %243 = vmatpush1.msra.mxu0 0.0
    %244 = vmatprep.subr.mxu0 0.0
    %245 = vmatpush1.msra.mxu0 0.0
    %246 = vmatprep.subr.mxu0 0.0
    %247 = vmatpush1.msra.mxu0 0.0
    %248 = vmatprep.subr.mxu0 0.0
    %249 = vmatpush1.msra.mxu0 0.0
    %250 = vmatprep.subr.mxu0 0.0
    %251 = vmatpush1.msra.mxu0 0.0
    %252 = vmatprep.subr.mxu0 0.0
    %253 = vmatpush1.msra.mxu0 0.0
    %254 = vmatprep.subr.mxu0 0.0
    %255 = vmatpush1.msra.mxu0 0.0
    %256 = vmatprep.subr.mxu0 0.0
    %257 = vmatpush1.msra.mxu0 0.0
    %258 = vmatprep.subr.mxu0 0.0
    %259 = vmatpush1.msra.mxu0 0.0
    %260 = vmatprep.subr.mxu0 0.0
    %261 = vmatpush1.msra.mxu0 0.0
    %262 = vmatprep.subr.mxu0 0.0
    %263 = vmatpush1.msra.mxu0 0.0
    %264 = vmatprep.subr.mxu0 0.0
    %265 = vmatpush1.msra.mxu0 0.0
    %266 = vmatprep.subr.mxu0 0.0
    %267 = vmatpush1.msra.mxu0 0.0
    %268 = vmatprep.mubr.f32.mxu0 0.0
    %269 = vmatmul.mubr.f32.gmra.mrb[0].mxu0 %v196
    %v270 = vpop.f32.mrb[0].mxu0
    %v271 = vadd.f32 %v193, %v270
    %v272 = vpop.f32.mrb[0].mxu0
    %273 = vmatprep.mubr.f32.mxu0 0.0
    %274 = vmatmul.mubr.f32.gmra.mrb[0].mxu0 %v198
    %v275 = vpop.f32.mrb[0].mxu0
    %v276 = vadd.f32 %v193, %v275
    %v277 = vpop.f32.mrb[0].mxu0
    %278 = vmatprep.mubr.f32.mxu0 0.0
    %279 = vmatmul.mubr.f32.gmra.mrb[0].mxu0 %v200
    %v280 = vpop.f32.mrb[0].mxu0
    %v281 = vadd.f32 %v193, %v280
    %v282 = vpop.f32.mrb[0].mxu0
    %283 = vmatprep.mubr.f32.mxu0 0.0
    %284 = vmatmul.mubr.f32.gmra.mrb[0].mxu0 %v202
    %v285 = vpop.f32.mrb[0].mxu0
    %v286 = vadd.f32 %v193, %v285
    %v287 = vpop.f32.mrb[0].mxu0
    %288 = vdwg.mxu0
    %290 = vrot.lane.b32.xlu0 %v271, 96
    %v291 = vpop.permute.xlu0 %290
    %vm292 = vcmask 64512
    %v293 = vsel %vm292, %v271, 0
    %v295 = vsel %vm292, %v291, 0
    %297 = vmatprep.subr.mxu0 0.0
    %298 = vmatpush1.xpose.msra.mxu0 %v295
    %299 = vmatprep.subr.mxu0 0.0
    %300 = vmatpush1.xpose.msra.mxu0 0.0
    %301 = vmatprep.subr.mxu0 0.0
    %302 = vmatpush1.xpose.msra.mxu0 0.0
    %303 = vmatprep.subr.mxu0 0.0
    %304 = vmatpush1.xpose.msra.mxu0 0.0
    %305 = vmatprep.subr.mxu0 0.0
    %306 = vmatpush1.xpose.msra.mxu0 0.0
    %307 = vmatprep.subr.mxu0 0.0
    %308 = vmatpush1.xpose.msra.mxu0 0.0
    %309 = vmatprep.subr.mxu0 0.0
    %310 = vmatpush1.xpose.msra.mxu0 0.0
    %311 = vmatprep.subr.mxu0 0.0
    %312 = vmatpush1.xpose.msra.mxu0 0.0
    %313 = vmatprep.subr.mxu0 0.0
    %314 = vmatpush1.xpose.msra.mxu0 0.0
    %315 = vmatprep.subr.mxu0 0.0
    %316 = vmatpush1.xpose.msra.mxu0 0.0
    %317 = vmatprep.subr.mxu0 0.0
    %318 = vmatpush1.xpose.msra.mxu0 0.0
    %319 = vmatprep.subr.mxu0 0.0
    %320 = vmatpush1.xpose.msra.mxu0 0.0
    %321 = vmatprep.subr.mxu0 0.0
    %322 = vmatpush1.xpose.msra.mxu0 0.0
    %323 = vmatprep.subr.mxu0 0.0
    %324 = vmatpush1.xpose.msra.mxu0 0.0
    %325 = vmatprep.subr.mxu0 0.0
    %326 = vmatpush1.xpose.msra.mxu0 0.0
    %327 = vmatprep.subr.mxu0 0.0
    %328 = vmatpush1.xpose.msra.mxu0 0.0
    %329 = vmatprep.subr.mxu0 0.0
    %330 = vmatpush1.xpose.msra.mxu0 0.0
    %331 = vmatprep.subr.mxu0 0.0
    %332 = vmatpush1.xpose.msra.mxu0 0.0
    %333 = vmatprep.subr.mxu0 0.0
    %334 = vmatpush1.xpose.msra.mxu0 0.0
    %335 = vmatprep.subr.mxu0 0.0
    %336 = vmatpush1.xpose.msra.mxu0 0.0
    %337 = vmatprep.subr.mxu0 0.0
    %338 = vmatpush1.xpose.msra.mxu0 0.0
    %339 = vmatprep.subr.mxu0 0.0
    %340 = vmatpush1.xpose.msra.mxu0 0.0
    %341 = vmatprep.subr.mxu0 0.0
    %342 = vmatpush1.xpose.msra.mxu0 0.0
    %343 = vmatprep.subr.mxu0 0.0
    %344 = vmatpush1.xpose.msra.mxu0 0.0
    %345 = vmatprep.subr.mxu0 0.0
    %346 = vmatpush1.xpose.msra.mxu0 0.0
    %347 = vmatprep.subr.mxu0 0.0
    %348 = vmatpush1.xpose.msra.mxu0 0.0
    %349 = vmatprep.subr.mxu0 0.0
    %350 = vmatpush1.xpose.msra.mxu0 0.0
    %351 = vmatprep.subr.mxu0 0.0
    %352 = vmatpush1.xpose.msra.mxu0 0.0
    %353 = vmatprep.subr.mxu0 0.0
    %354 = vmatpush1.xpose.msra.mxu0 0.0
    %355 = vmatprep.subr.mxu0 0.0
    %356 = vmatpush1.xpose.msra.mxu0 0.0
    %357 = vmatprep.subr.mxu0 0.0
    %358 = vmatpush1.xpose.msra.mxu0 0.0
    %359 = vmatprep.subr.mxu0 0.0
    %360 = vmatpush1.xpose.msra.mxu0 0.0
    %361 = vmatprep.mubr.f32.mxu0 0.0
    %362 = vmatmul.mubr.f32.gmra.mrb[0].mxu0 %v293
    %v363 = vpop.f32.mrb[0].mxu0
    %v364 = vadd.f32 0.0, %v363
    %v365 = vpop.f32.mrb[0].mxu0
    %366 = vdwg.mxu0
    %v367 = vmul.f32 %v364, 0.35355338
    %v368 = vsel %vm292, %v367, -inf
    %369 = vmax.xlane.f32.xlu0 %v368
    %v370 = vpop.xlane.xlu0 %369
    %v371 = vsub.f32 %v367, %v370
    %v372 = vmul.f32 %v371, 1.442695
    %v373 = vpow.pop %v372
    %v374 = vsel %vm292, %v373, 0.0
    %375 = vadd.xlane.f32.xlu0 %v374
    %v376 = vpop.xlane.xlu0 %375
    %v377 = vrcp.pop %v376
    %v378 = vmul.f32 %v373, %v377
    %380 = vrot.lane.b32.xlu0 %v281, 64
    %v381 = vpop.permute.xlu0 %380
    %v384 = vsel %vm292, %v378, 0
    %386 = vmatprep.subr.mxu0 0.0
    %387 = vmatpush1.msra.mxu0 %v381
    %388 = vmatprep.subr.mxu0 0.0
    %389 = vmatpush1.msra.mxu0 0.0
    %390 = vmatprep.subr.mxu0 0.0
    %391 = vmatpush1.msra.mxu0 0.0
    %392 = vmatprep.subr.mxu0 0.0
    %393 = vmatpush1.msra.mxu0 0.0
    %394 = vmatprep.subr.mxu0 0.0
    %395 = vmatpush1.msra.mxu0 0.0
    %396 = vmatprep.subr.mxu0 0.0
    %397 = vmatpush1.msra.mxu0 0.0
    %398 = vmatprep.subr.mxu0 0.0
    %399 = vmatpush1.msra.mxu0 0.0
    %400 = vmatprep.subr.mxu0 0.0
    %401 = vmatpush1.msra.mxu0 0.0
    %402 = vmatprep.subr.mxu0 0.0
    %403 = vmatpush1.msra.mxu0 0.0
    %404 = vmatprep.subr.mxu0 0.0
    %405 = vmatpush1.msra.mxu0 0.0
    %406 = vmatprep.subr.mxu0 0.0
    %407 = vmatpush1.msra.mxu0 0.0
    %408 = vmatprep.subr.mxu0 0.0
    %409 = vmatpush1.msra.mxu0 0.0
    %410 = vmatprep.subr.mxu0 0.0
    %411 = vmatpush1.msra.mxu0 0.0
    %412 = vmatprep.subr.mxu0 0.0
    %413 = vmatpush1.msra.mxu0 0.0
    %414 = vmatprep.subr.mxu0 0.0
    %415 = vmatpush1.msra.mxu0 0.0
    %416 = vmatprep.subr.mxu0 0.0
    %417 = vmatpush1.msra.mxu0 0.0
    %418 = vmatprep.subr.mxu0 0.0
    %419 = vmatpush1.msra.mxu0 0.0
    %420 = vmatprep.subr.mxu0 0.0
    %421 = vmatpush1.msra.mxu0 0.0
    %422 = vmatprep.subr.mxu0 0.0
    %423 = vmatpush1.msra.mxu0 0.0
    %424 = vmatprep.subr.mxu0 0.0
    %425 = vmatpush1.msra.mxu0 0.0
    %426 = vmatprep.subr.mxu0 0.0
    %427 = vmatpush1.msra.mxu0 0.0
    %428 = vmatprep.subr.mxu0 0.0
    %429 = vmatpush1.msra.mxu0 0.0
    %430 = vmatprep.subr.mxu0 0.0
    %431 = vmatpush1.msra.mxu0 0.0
    %432 = vmatprep.subr.mxu0 0.0
    %433 = vmatpush1.msra.mxu0 0.0
    %434 = vmatprep.subr.mxu0 0.0
    %435 = vmatpush1.msra.mxu0 0.0
    %436 = vmatprep.subr.mxu0 0.0
    %437 = vmatpush1.msra.mxu0 0.0
    %438 = vmatprep.subr.mxu0 0.0
    %439 = vmatpush1.msra.mxu0 0.0
    %440 = vmatprep.subr.mxu0 0.0
    %441 = vmatpush1.msra.mxu0 0.0
    %442 = vmatprep.subr.mxu0 0.0
    %443 = vmatpush1.msra.mxu0 0.0
    %444 = vmatprep.subr.mxu0 0.0
    %445 = vmatpush1.msra.mxu0 0.0
    %446 = vmatprep.subr.mxu0 0.0
    %447 = vmatpush1.msra.mxu0 0.0
    %448 = vmatprep.subr.mxu0 0.0
    %449 = vmatpush1.msra.mxu0 0.0
    %450 = vmatprep.mubr.f32.mxu0 0.0
    %451 = vmatmul.mubr.f32.gmra.mrb[0].mxu0 %v384
    %v452 = vpop.f32.mrb[0].mxu0
    %v453 = vadd.f32 0.0, %v452
    %v454 = vpop.f32.mrb[0].mxu0
    %455 = vdwg.mxu0
    %456 = vst.msk [vmem:[#allocation2] sm:$0xff] %vm292, %v453
    %457 = vrot.lane.b32.xlu0 %v271, 120
    %v458 = vpop.permute.xlu0 %457
    %459 = vrot.lane.b32.xlu0 %v271, 88
    %v460 = vpop.permute.xlu0 %459
    %v461 = vsel %vm292, %v458, 0
    %v463 = vsel %vm292, %v460, 0
    %465 = vmatprep.subr.mxu0 0.0
    %466 = vmatpush1.xpose.msra.mxu0 %v463
    %467 = vmatprep.subr.mxu0 0.0
    %468 = vmatpush1.xpose.msra.mxu0 0.0
    %469 = vmatprep.subr.mxu0 0.0
    %470 = vmatpush1.xpose.msra.mxu0 0.0
    %471 = vmatprep.subr.mxu0 0.0
    %472 = vmatpush1.xpose.msra.mxu0 0.0
    %473 = vmatprep.subr.mxu0 0.0
    %474 = vmatpush1.xpose.msra.mxu0 0.0
    %475 = vmatprep.subr.mxu0 0.0
    %476 = vmatpush1.xpose.msra.mxu0 0.0
    %477 = vmatprep.subr.mxu0 0.0
    %478 = vmatpush1.xpose.msra.mxu0 0.0
    %479 = vmatprep.subr.mxu0 0.0
    %480 = vmatpush1.xpose.msra.mxu0 0.0
    %481 = vmatprep.subr.mxu0 0.0
    %482 = vmatpush1.xpose.msra.mxu0 0.0
    %483 = vmatprep.subr.mxu0 0.0
    %484 = vmatpush1.xpose.msra.mxu0 0.0
    %485 = vmatprep.subr.mxu0 0.0
    %486 = vmatpush1.xpose.msra.mxu0 0.0
    %487 = vmatprep.subr.mxu0 0.0
    %488 = vmatpush1.xpose.msra.mxu0 0.0
    %489 = vmatprep.subr.mxu0 0.0
    %490 = vmatpush1.xpose.msra.mxu0 0.0
    %491 = vmatprep.subr.mxu0 0.0
    %492 = vmatpush1.xpose.msra.mxu0 0.0
    %493 = vmatprep.subr.mxu0 0.0
    %494 = vmatpush1.xpose.msra.mxu0 0.0
    %495 = vmatprep.subr.mxu0 0.0
    %496 = vmatpush1.xpose.msra.mxu0 0.0
    %497 = vmatprep.subr.mxu0 0.0
    %498 = vmatpush1.xpose.msra.mxu0 0.0
    %499 = vmatprep.subr.mxu0 0.0
    %500 = vmatpush1.xpose.msra.mxu0 0.0
    %501 = vmatprep.subr.mxu0 0.0
    %502 = vmatpush1.xpose.msra.mxu0 0.0
    %503 = vmatprep.subr.mxu0 0.0
    %504 = vmatpush1.xpose.msra.mxu0 0.0
    %505 = vmatprep.subr.mxu0 0.0
    %506 = vmatpush1.xpose.msra.mxu0 0.0
    %507 = vmatprep.subr.mxu0 0.0
    %508 = vmatpush1.xpose.msra.mxu0 0.0
    %509 = vmatprep.subr.mxu0 0.0
    %510 = vmatpush1.xpose.msra.mxu0 0.0
    %511 = vmatprep.subr.mxu0 0.0
    %512 = vmatpush1.xpose.msra.mxu0 0.0
    %513 = vmatprep.subr.mxu0 0.0
    %514 = vmatpush1.xpose.msra.mxu0 0.0
    %515 = vmatprep.subr.mxu0 0.0
    %516 = vmatpush1.xpose.msra.mxu0 0.0
    %517 = vmatprep.subr.mxu0 0.0
    %518 = vmatpush1.xpose.msra.mxu0 0.0
    %519 = vmatprep.subr.mxu0 0.0
    %520 = vmatpush1.xpose.msra.mxu0 0.0
    %521 = vmatprep.subr.mxu0 0.0
    %522 = vmatpush1.xpose.msra.mxu0 0.0
    %523 = vmatprep.subr.mxu0 0.0
    %524 = vmatpush1.xpose.msra.mxu0 0.0
    %525 = vmatprep.subr.mxu0 0.0
    %526 = vmatpush1.xpose.msra.mxu0 0.0
    %527 = vmatprep.subr.mxu0 0.0
    %528 = vmatpush1.xpose.msra.mxu0 0.0
    %529 = vmatprep.mubr.f32.mxu0 0.0
    %530 = vmatmul.mubr.f32.gmra.mrb[0].mxu0 %v461
    %v531 = vpop.f32.mrb[0].mxu0
    %v532 = vadd.f32 0.0, %v531
    %v533 = vpop.f32.mrb[0].mxu0
    %534 = vdwg.mxu0
    %v535 = vmul.f32 %v532, 0.35355338
    %v536 = vsel %vm292, %v535, -inf
    %537 = vmax.xlane.f32.xlu0 %v536
    %v538 = vpop.xlane.xlu0 %537
    %v539 = vsub.f32 %v535, %v538
    %v540 = vmul.f32 %v539, 1.442695
    %v541 = vpow.pop %v540
    %v542 = vsel %vm292, %v541, 0.0
    %543 = vadd.xlane.f32.xlu0 %v542
    %v544 = vpop.xlane.xlu0 %543
    %v545 = vrcp.pop %v544
    %v546 = vmul.f32 %v541, %v545
    %547 = vrot.lane.b32.xlu0 %v281, 56
    %v548 = vpop.permute.xlu0 %547
    %v551 = vsel %vm292, %v546, 0
    %553 = vmatprep.subr.mxu0 0.0
    %554 = vmatpush1.msra.mxu0 %v548
    %555 = vmatprep.subr.mxu0 0.0
    %556 = vmatpush1.msra.mxu0 0.0
    %557 = vmatprep.subr.mxu0 0.0
    %558 = vmatpush1.msra.mxu0 0.0
    %559 = vmatprep.subr.mxu0 0.0
    %560 = vmatpush1.msra.mxu0 0.0
    %561 = vmatprep.subr.mxu0 0.0
    %562 = vmatpush1.msra.mxu0 0.0
    %563 = vmatprep.subr.mxu0 0.0
    %564 = vmatpush1.msra.mxu0 0.0
    %565 = vmatprep.subr.mxu0 0.0
    %566 = vmatpush1.msra.mxu0 0.0
    %567 = vmatprep.subr.mxu0 0.0
    %568 = vmatpush1.msra.mxu0 0.0
    %569 = vmatprep.subr.mxu0 0.0
    %570 = vmatpush1.msra.mxu0 0.0
    %571 = vmatprep.subr.mxu0 0.0
    %572 = vmatpush1.msra.mxu0 0.0
    %573 = vmatprep.subr.mxu0 0.0
    %574 = vmatpush1.msra.mxu0 0.0
    %575 = vmatprep.subr.mxu0 0.0
    %576 = vmatpush1.msra.mxu0 0.0
    %577 = vmatprep.subr.mxu0 0.0
    %578 = vmatpush1.msra.mxu0 0.0
    %579 = vmatprep.subr.mxu0 0.0
    %580 = vmatpush1.msra.mxu0 0.0
    %581 = vmatprep.subr.mxu0 0.0
    %582 = vmatpush1.msra.mxu0 0.0
    %583 = vmatprep.subr.mxu0 0.0
    %584 = vmatpush1.msra.mxu0 0.0
    %585 = vmatprep.subr.mxu0 0.0
    %586 = vmatpush1.msra.mxu0 0.0
    %587 = vmatprep.subr.mxu0 0.0
    %588 = vmatpush1.msra.mxu0 0.0
    %589 = vmatprep.subr.mxu0 0.0
    %590 = vmatpush1.msra.mxu0 0.0
    %591 = vmatprep.subr.mxu0 0.0
    %592 = vmatpush1.msra.mxu0 0.0
    %593 = vmatprep.subr.mxu0 0.0
    %594 = vmatpush1.msra.mxu0 0.0
    %595 = vmatprep.subr.mxu0 0.0
    %596 = vmatpush1.msra.mxu0 0.0
    %597 = vmatprep.subr.mxu0 0.0
    %598 = vmatpush1.msra.mxu0 0.0
    %599 = vmatprep.subr.mxu0 0.0
    %600 = vmatpush1.msra.mxu0 0.0
    %601 = vmatprep.subr.mxu0 0.0
    %602 = vmatpush1.msra.mxu0 0.0
    %603 = vmatprep.subr.mxu0 0.0
    %604 = vmatpush1.msra.mxu0 0.0
    %605 = vmatprep.subr.mxu0 0.0
    %606 = vmatpush1.msra.mxu0 0.0
    %607 = vmatprep.subr.mxu0 0.0
    %608 = vmatpush1.msra.mxu0 0.0
    %609 = vmatprep.subr.mxu0 0.0
    %610 = vmatpush1.msra.mxu0 0.0
    %611 = vmatprep.subr.mxu0 0.0
    %612 = vmatpush1.msra.mxu0 0.0
    %613 = vmatprep.subr.mxu0 0.0
    %614 = vmatpush1.msra.mxu0 0.0
    %615 = vmatprep.subr.mxu0 0.0
    %616 = vmatpush1.msra.mxu0 0.0
    %617 = vmatprep.mubr.f32.mxu0 0.0
    %618 = vmatmul.mubr.f32.gmra.mrb[0].mxu0 %v551
    %v619 = vpop.f32.mrb[0].mxu0
    %v620 = vadd.f32 0.0, %v619
    %v621 = vpop.f32.mrb[0].mxu0
    %622 = vdwg.mxu0
    %624 = vrot.lane.b32.xlu0 %v620, 8
    %v625 = vpop.permute.xlu0 %624
    %vm627 = vcmask 130112
    %628 = vst.msk [vmem:[#allocation2] sm:$0xff] %vm627, %v625
    %629 = vrot.lane.b32.xlu0 %v271, 112
    %v630 = vpop.permute.xlu0 %629
    %631 = vrot.lane.b32.xlu0 %v271, 80
    %v632 = vpop.permute.xlu0 %631
    %v633 = vsel %vm292, %v630, 0
    %v635 = vsel %vm292, %v632, 0
    %637 = vmatprep.subr.mxu0 0.0
    %638 = vmatpush1.xpose.msra.mxu0 %v635
    %639 = vmatprep.subr.mxu0 0.0
    %640 = vmatpush1.xpose.msra.mxu0 0.0
    %641 = vmatprep.subr.mxu0 0.0
    %642 = vmatpush1.xpose.msra.mxu0 0.0
    %643 = vmatprep.subr.mxu0 0.0
    %644 = vmatpush1.xpose.msra.mxu0 0.0
    %645 = vmatprep.subr.mxu0 0.0
    %646 = vmatpush1.xpose.msra.mxu0 0.0
    %647 = vmatprep.subr.mxu0 0.0
    %648 = vmatpush1.xpose.msra.mxu0 0.0
    %649 = vmatprep.subr.mxu0 0.0
    %650 = vmatpush1.xpose.msra.mxu0 0.0
    %651 = vmatprep.subr.mxu0 0.0
    %652 = vmatpush1.xpose.msra.mxu0 0.0
    %653 = vmatprep.subr.mxu0 0.0
    %654 = vmatpush1.xpose.msra.mxu0 0.0
    %655 = vmatprep.subr.mxu0 0.0
    %656 = vmatpush1.xpose.msra.mxu0 0.0
    %657 = vmatprep.subr.mxu0 0.0
    %658 = vmatpush1.xpose.msra.mxu0 0.0
    %659 = vmatprep.subr.mxu0 0.0
    %660 = vmatpush1.xpose.msra.mxu0 0.0
    %661 = vmatprep.subr.mxu0 0.0
    %662 = vmatpush1.xpose.msra.mxu0 0.0
    %663 = vmatprep.subr.mxu0 0.0
    %664 = vmatpush1.xpose.msra.mxu0 0.0
    %665 = vmatprep.subr.mxu0 0.0
    %666 = vmatpush1.xpose.msra.mxu0 0.0
    %667 = vmatprep.subr.mxu0 0.0
    %668 = vmatpush1.xpose.msra.mxu0 0.0
    %669 = vmatprep.subr.mxu0 0.0
    %670 = vmatpush1.xpose.msra.mxu0 0.0
    %671 = vmatprep.subr.mxu0 0.0
    %672 = vmatpush1.xpose.msra.mxu0 0.0
    %673 = vmatprep.subr.mxu0 0.0
    %674 = vmatpush1.xpose.msra.mxu0 0.0
    %675 = vmatprep.subr.mxu0 0.0
    %676 = vmatpush1.xpose.msra.mxu0 0.0
    %677 = vmatprep.subr.mxu0 0.0
    %678 = vmatpush1.xpose.msra.mxu0 0.0
    %679 = vmatprep.subr.mxu0 0.0
    %680 = vmatpush1.xpose.msra.mxu0 0.0
    %681 = vmatprep.subr.mxu0 0.0
    %682 = vmatpush1.xpose.msra.mxu0 0.0
    %683 = vmatprep.subr.mxu0 0.0
    %684 = vmatpush1.xpose.msra.mxu0 0.0
    %685 = vmatprep.subr.mxu0 0.0
    %686 = vmatpush1.xpose.msra.mxu0 0.0
    %687 = vmatprep.subr.mxu0 0.0
    %688 = vmatpush1.xpose.msra.mxu0 0.0
    %689 = vmatprep.subr.mxu0 0.0
    %690 = vmatpush1.xpose.msra.mxu0 0.0
    %691 = vmatprep.subr.mxu0 0.0
    %692 = vmatpush1.xpose.msra.mxu0 0.0
    %693 = vmatprep.subr.mxu0 0.0
    %694 = vmatpush1.xpose.msra.mxu0 0.0
    %695 = vmatprep.subr.mxu0 0.0
    %696 = vmatpush1.xpose.msra.mxu0 0.0
    %697 = vmatprep.subr.mxu0 0.0
    %698 = vmatpush1.xpose.msra.mxu0 0.0
    %699 = vmatprep.subr.mxu0 0.0
    %700 = vmatpush1.xpose.msra.mxu0 0.0
    %701 = vmatprep.mubr.f32.mxu0 0.0
    %702 = vmatmul.mubr.f32.gmra.mrb[0].mxu0 %v633
    %v703 = vpop.f32.mrb[0].mxu0
    %v704 = vadd.f32 0.0, %v703
    %v705 = vpop.f32.mrb[0].mxu0
    %706 = vdwg.mxu0
    %v707 = vmul.f32 %v704, 0.35355338
    %v708 = vsel %vm292, %v707, -inf
    %709 = vmax.xlane.f32.xlu0 %v708
    %v710 = vpop.xlane.xlu0 %709
    %v711 = vsub.f32 %v707, %v710
    %v712 = vmul.f32 %v711, 1.442695
    %v713 = vpow.pop %v712
    %v714 = vsel %vm292, %v713, 0.0
    %715 = vadd.xlane.f32.xlu0 %v714
    %v716 = vpop.xlane.xlu0 %715
    %v717 = vrcp.pop %v716
    %v718 = vmul.f32 %v713, %v717
    %719 = vrot.lane.b32.xlu0 %v281, 48
    %v720 = vpop.permute.xlu0 %719
    %v723 = vsel %vm292, %v718, 0
    %725 = vmatprep.subr.mxu0 0.0
    %726 = vmatpush1.msra.mxu0 %v720
    %727 = vmatprep.subr.mxu0 0.0
    %728 = vmatpush1.msra.mxu0 0.0
    %729 = vmatprep.subr.mxu0 0.0
    %730 = vmatpush1.msra.mxu0 0.0
    %731 = vmatprep.subr.mxu0 0.0
    %732 = vmatpush1.msra.mxu0 0.0
    %733 = vmatprep.subr.mxu0 0.0
    %734 = vmatpush1.msra.mxu0 0.0
    %735 = vmatprep.subr.mxu0 0.0
    %736 = vmatpush1.msra.mxu0 0.0
    %737 = vmatprep.subr.mxu0 0.0
    %738 = vmatpush1.msra.mxu0 0.0
    %739 = vmatprep.subr.mxu0 0.0
    %740 = vmatpush1.msra.mxu0 0.0
    %741 = vmatprep.subr.mxu0 0.0
    %742 = vmatpush1.msra.mxu0 0.0
    %743 = vmatprep.subr.mxu0 0.0
    %744 = vmatpush1.msra.mxu0 0.0
    %745 = vmatprep.subr.mxu0 0.0
    %746 = vmatpush1.msra.mxu0 0.0
    %747 = vmatprep.subr.mxu0 0.0
    %748 = vmatpush1.msra.mxu0 0.0
    %749 = vmatprep.subr.mxu0 0.0
    %750 = vmatpush1.msra.mxu0 0.0
    %751 = vmatprep.subr.mxu0 0.0
    %752 = vmatpush1.msra.mxu0 0.0
    %753 = vmatprep.subr.mxu0 0.0
    %754 = vmatpush1.msra.mxu0 0.0
    %755 = vmatprep.subr.mxu0 0.0
    %756 = vmatpush1.msra.mxu0 0.0
    %757 = vmatprep.subr.mxu0 0.0
    %758 = vmatpush1.msra.mxu0 0.0
    %759 = vmatprep.subr.mxu0 0.0
    %760 = vmatpush1.msra.mxu0 0.0
    %761 = vmatprep.subr.mxu0 0.0
    %762 = vmatpush1.msra.mxu0 0.0
    %763 = vmatprep.subr.mxu0 0.0
    %764 = vmatpush1.msra.mxu0 0.0
    %765 = vmatprep.subr.mxu0 0.0
    %766 = vmatpush1.msra.mxu0 0.0
    %767 = vmatprep.subr.mxu0 0.0
    %768 = vmatpush1.msra.mxu0 0.0
    %769 = vmatprep.subr.mxu0 0.0
    %770 = vmatpush1.msra.mxu0 0.0
    %771 = vmatprep.subr.mxu0 0.0
    %772 = vmatpush1.msra.mxu0 0.0
    %773 = vmatprep.subr.mxu0 0.0
    %774 = vmatpush1.msra.mxu0 0.0
    %775 = vmatprep.subr.mxu0 0.0
    %776 = vmatpush1.msra.mxu0 0.0
    %777 = vmatprep.subr.mxu0 0.0
    %778 = vmatpush1.msra.mxu0 0.0
    %779 = vmatprep.subr.mxu0 0.0
    %780 = vmatpush1.msra.mxu0 0.0
    %781 = vmatprep.subr.mxu0 0.0
    %782 = vmatpush1.msra.mxu0 0.0
    %783 = vmatprep.subr.mxu0 0.0
    %784 = vmatpush1.msra.mxu0 0.0
    %785 = vmatprep.subr.mxu0 0.0
    %786 = vmatpush1.msra.mxu0 0.0
    %787 = vmatprep.subr.mxu0 0.0
    %788 = vmatpush1.msra.mxu0 0.0
    %789 = vmatprep.mubr.f32.mxu0 0.0
    %790 = vmatmul.mubr.f32.gmra.mrb[0].mxu0 %v723
    %v791 = vpop.f32.mrb[0].mxu0
    %v792 = vadd.f32 0.0, %v791
    %v793 = vpop.f32.mrb[0].mxu0
    %794 = vdwg.mxu0
    %796 = vrot.lane.b32.xlu0 %v792, 16
    %v797 = vpop.permute.xlu0 %796
    %vm799 = vcmask 195712
    %800 = vst.msk [vmem:[#allocation2] sm:$0xff] %vm799, %v797
    %801 = vrot.lane.b32.xlu0 %v271, 104
    %v802 = vpop.permute.xlu0 %801
    %803 = vrot.lane.b32.xlu0 %v271, 72
    %v804 = vpop.permute.xlu0 %803
    %v805 = vsel %vm292, %v802, 0
    %v807 = vsel %vm292, %v804, 0
    %809 = vmatprep.subr.mxu0 0.0
    %810 = vmatpush1.xpose.msra.mxu0 %v807
    %811 = vmatprep.subr.mxu0 0.0
    %812 = vmatpush1.xpose.msra.mxu0 0.0
    %813 = vmatprep.subr.mxu0 0.0
    %814 = vmatpush1.xpose.msra.mxu0 0.0
    %815 = vmatprep.subr.mxu0 0.0
    %816 = vmatpush1.xpose.msra.mxu0 0.0
    %817 = vmatprep.subr.mxu0 0.0
    %818 = vmatpush1.xpose.msra.mxu0 0.0
    %819 = vmatprep.subr.mxu0 0.0
    %820 = vmatpush1.xpose.msra.mxu0 0.0
    %821 = vmatprep.subr.mxu0 0.0
    %822 = vmatpush1.xpose.msra.mxu0 0.0
    %823 = vmatprep.subr.mxu0 0.0
    %824 = vmatpush1.xpose.msra.mxu0 0.0
    %825 = vmatprep.subr.mxu0 0.0
    %826 = vmatpush1.xpose.msra.mxu0 0.0
    %827 = vmatprep.subr.mxu0 0.0
    %828 = vmatpush1.xpose.msra.mxu0 0.0
    %829 = vmatprep.subr.mxu0 0.0
    %830 = vmatpush1.xpose.msra.mxu0 0.0
    %831 = vmatprep.subr.mxu0 0.0
    %832 = vmatpush1.xpose.msra.mxu0 0.0
    %833 = vmatprep.subr.mxu0 0.0
    %834 = vmatpush1.xpose.msra.mxu0 0.0
    %835 = vmatprep.subr.mxu0 0.0
    %836 = vmatpush1.xpose.msra.mxu0 0.0
    %837 = vmatprep.subr.mxu0 0.0
    %838 = vmatpush1.xpose.msra.mxu0 0.0
    %839 = vmatprep.subr.mxu0 0.0
    %840 = vmatpush1.xpose.msra.mxu0 0.0
    %841 = vmatprep.subr.mxu0 0.0
    %842 = vmatpush1.xpose.msra.mxu0 0.0
    %843 = vmatprep.subr.mxu0 0.0
    %844 = vmatpush1.xpose.msra.mxu0 0.0
    %845 = vmatprep.subr.mxu0 0.0
    %846 = vmatpush1.xpose.msra.mxu0 0.0
    %847 = vmatprep.subr.mxu0 0.0
    %848 = vmatpush1.xpose.msra.mxu0 0.0
    %849 = vmatprep.subr.mxu0 0.0
    %850 = vmatpush1.xpose.msra.mxu0 0.0
    %851 = vmatprep.subr.mxu0 0.0
    %852 = vmatpush1.xpose.msra.mxu0 0.0
    %853 = vmatprep.subr.mxu0 0.0
    %854 = vmatpush1.xpose.msra.mxu0 0.0
    %855 = vmatprep.subr.mxu0 0.0
    %856 = vmatpush1.xpose.msra.mxu0 0.0
    %857 = vmatprep.subr.mxu0 0.0
    %858 = vmatpush1.xpose.msra.mxu0 0.0
    %859 = vmatprep.subr.mxu0 0.0
    %860 = vmatpush1.xpose.msra.mxu0 0.0
    %861 = vmatprep.subr.mxu0 0.0
    %862 = vmatpush1.xpose.msra.mxu0 0.0
    %863 = vmatprep.subr.mxu0 0.0
    %864 = vmatpush1.xpose.msra.mxu0 0.0
    %865 = vmatprep.subr.mxu0 0.0
    %866 = vmatpush1.xpose.msra.mxu0 0.0
    %867 = vmatprep.subr.mxu0 0.0
    %868 = vmatpush1.xpose.msra.mxu0 0.0
    %869 = vmatprep.subr.mxu0 0.0
    %870 = vmatpush1.xpose.msra.mxu0 0.0
    %871 = vmatprep.subr.mxu0 0.0
    %872 = vmatpush1.xpose.msra.mxu0 0.0
    %873 = vmatprep.mubr.f32.mxu0 0.0
    %874 = vmatmul.mubr.f32.gmra.mrb[0].mxu0 %v805
    %v875 = vpop.f32.mrb[0].mxu0
    %v876 = vadd.f32 0.0, %v875
    %v877 = vpop.f32.mrb[0].mxu0
    %878 = vdwg.mxu0
    %v879 = vmul.f32 %v876, 0.35355338
    %v880 = vsel %vm292, %v879, -inf
    %881 = vmax.xlane.f32.xlu0 %v880
    %v882 = vpop.xlane.xlu0 %881
    %v883 = vsub.f32 %v879, %v882
    %v884 = vmul.f32 %v883, 1.442695
    %v885 = vpow.pop %v884
    %v886 = vsel %vm292, %v885, 0.0
    %887 = vadd.xlane.f32.xlu0 %v886
    %v888 = vpop.xlane.xlu0 %887
    %v889 = vrcp.pop %v888
    %v890 = vmul.f32 %v885, %v889
    %891 = vrot.lane.b32.xlu0 %v281, 40
    %v892 = vpop.permute.xlu0 %891
    %v895 = vsel %vm292, %v890, 0
    %897 = vmatprep.subr.mxu0 0.0
    %898 = vmatpush1.msra.mxu0 %v892
    %899 = vmatprep.subr.mxu0 0.0
    %900 = vmatpush1.msra.mxu0 0.0
    %901 = vmatprep.subr.mxu0 0.0
    %902 = vmatpush1.msra.mxu0 0.0
    %903 = vmatprep.subr.mxu0 0.0
    %904 = vmatpush1.msra.mxu0 0.0
    %905 = vmatprep.subr.mxu0 0.0
    %906 = vmatpush1.msra.mxu0 0.0
    %907 = vmatprep.subr.mxu0 0.0
    %908 = vmatpush1.msra.mxu0 0.0
    %909 = vmatprep.subr.mxu0 0.0
    %910 = vmatpush1.msra.mxu0 0.0
    %911 = vmatprep.subr.mxu0 0.0
    %912 = vmatpush1.msra.mxu0 0.0
    %913 = vmatprep.subr.mxu0 0.0
    %914 = vmatpush1.msra.mxu0 0.0
    %915 = vmatprep.subr.mxu0 0.0
    %916 = vmatpush1.msra.mxu0 0.0
    %917 = vmatprep.subr.mxu0 0.0
    %918 = vmatpush1.msra.mxu0 0.0
    %919 = vmatprep.subr.mxu0 0.0
    %920 = vmatpush1.msra.mxu0 0.0
    %921 = vmatprep.subr.mxu0 0.0
    %922 = vmatpush1.msra.mxu0 0.0
    %923 = vmatprep.subr.mxu0 0.0
    %924 = vmatpush1.msra.mxu0 0.0
    %925 = vmatprep.subr.mxu0 0.0
    %926 = vmatpush1.msra.mxu0 0.0
    %927 = vmatprep.subr.mxu0 0.0
    %928 = vmatpush1.msra.mxu0 0.0
    %929 = vmatprep.subr.mxu0 0.0
    %930 = vmatpush1.msra.mxu0 0.0
    %931 = vmatprep.subr.mxu0 0.0
    %932 = vmatpush1.msra.mxu0 0.0
    %933 = vmatprep.subr.mxu0 0.0
    %934 = vmatpush1.msra.mxu0 0.0
    %935 = vmatprep.subr.mxu0 0.0
    %936 = vmatpush1.msra.mxu0 0.0
    %937 = vmatprep.subr.mxu0 0.0
    %938 = vmatpush1.msra.mxu0 0.0
    %939 = vmatprep.subr.mxu0 0.0
    %940 = vmatpush1.msra.mxu0 0.0
    %941 = vmatprep.subr.mxu0 0.0
    %942 = vmatpush1.msra.mxu0 0.0
    %943 = vmatprep.subr.mxu0 0.0
    %944 = vmatpush1.msra.mxu0 0.0
    %945 = vmatprep.subr.mxu0 0.0
    %946 = vmatpush1.msra.mxu0 0.0
    %947 = vmatprep.subr.mxu0 0.0
    %948 = vmatpush1.msra.mxu0 0.0
    %949 = vmatprep.subr.mxu0 0.0
    %950 = vmatpush1.msra.mxu0 0.0
    %951 = vmatprep.subr.mxu0 0.0
    %952 = vmatpush1.msra.mxu0 0.0
    %953 = vmatprep.subr.mxu0 0.0
    %954 = vmatpush1.msra.mxu0 0.0
    %955 = vmatprep.subr.mxu0 0.0
    %956 = vmatpush1.msra.mxu0 0.0
    %957 = vmatprep.subr.mxu0 0.0
    %958 = vmatpush1.msra.mxu0 0.0
    %959 = vmatprep.subr.mxu0 0.0
    %960 = vmatpush1.msra.mxu0 0.0
    %961 = vmatprep.mubr.f32.mxu0 0.0
    %962 = vmatmul.mubr.f32.gmra.mrb[0].mxu0 %v895
    %v963 = vpop.f32.mrb[0].mxu0
    %v964 = vadd.f32 0.0, %v963
    %v965 = vpop.f32.mrb[0].mxu0
    %966 = vdwg.mxu0
    %968 = vrot.lane.b32.xlu0 %v964, 24
    %v969 = vpop.permute.xlu0 %968
    %vm971 = vcmask 261312
    %972 = vst.msk [vmem:[#allocation2] sm:$0xff] %vm971, %v969
    %974 = vrot.lane.b32.xlu0 %v276, 96
    %v975 = vpop.permute.xlu0 %974
    %v976 = vsel %vm292, %v276, 0
    %v978 = vsel %vm292, %v975, 0
    %980 = vmatprep.subr.mxu0 0.0
    %981 = vmatpush1.xpose.msra.mxu0 %v978
    %982 = vmatprep.subr.mxu0 0.0
    %983 = vmatpush1.xpose.msra.mxu0 0.0
    %984 = vmatprep.subr.mxu0 0.0
    %985 = vmatpush1.xpose.msra.mxu0 0.0
    %986 = vmatprep.subr.mxu0 0.0
    %987 = vmatpush1.xpose.msra.mxu0 0.0
    %988 = vmatprep.subr.mxu0 0.0
    %989 = vmatpush1.xpose.msra.mxu0 0.0
    %990 = vmatprep.subr.mxu0 0.0
    %991 = vmatpush1.xpose.msra.mxu0 0.0
    %992 = vmatprep.subr.mxu0 0.0
    %993 = vmatpush1.xpose.msra.mxu0 0.0
    %994 = vmatprep.subr.mxu0 0.0
    %995 = vmatpush1.xpose.msra.mxu0 0.0
    %996 = vmatprep.subr.mxu0 0.0
    %997 = vmatpush1.xpose.msra.mxu0 0.0
    %998 = vmatprep.subr.mxu0 0.0
    %999 = vmatpush1.xpose.msra.mxu0 0.0
    %1000 = vmatprep.subr.mxu0 0.0
    %1001 = vmatpush1.xpose.msra.mxu0 0.0
    %1002 = vmatprep.subr.mxu0 0.0
    %1003 = vmatpush1.xpose.msra.mxu0 0.0
    %1004 = vmatprep.subr.mxu0 0.0
    %1005 = vmatpush1.xpose.msra.mxu0 0.0
    %1006 = vmatprep.subr.mxu0 0.0
    %1007 = vmatpush1.xpose.msra.mxu0 0.0
    %1008 = vmatprep.subr.mxu0 0.0
    %1009 = vmatpush1.xpose.msra.mxu0 0.0
    %1010 = vmatprep.subr.mxu0 0.0
    %1011 = vmatpush1.xpose.msra.mxu0 0.0
    %1012 = vmatprep.subr.mxu0 0.0
    %1013 = vmatpush1.xpose.msra.mxu0 0.0
    %1014 = vmatprep.subr.mxu0 0.0
    %1015 = vmatpush1.xpose.msra.mxu0 0.0
    %1016 = vmatprep.subr.mxu0 0.0
    %1017 = vmatpush1.xpose.msra.mxu0 0.0
    %1018 = vmatprep.subr.mxu0 0.0
    %1019 = vmatpush1.xpose.msra.mxu0 0.0
    %1020 = vmatprep.subr.mxu0 0.0
    %1021 = vmatpush1.xpose.msra.mxu0 0.0
    %1022 = vmatprep.subr.mxu0 0.0
    %1023 = vmatpush1.xpose.msra.mxu0 0.0
    %1024 = vmatprep.subr.mxu0 0.0
    %1025 = vmatpush1.xpose.msra.mxu0 0.0
    %1026 = vmatprep.subr.mxu0 0.0
    %1027 = vmatpush1.xpose.msra.mxu0 0.0
    %1028 = vmatprep.subr.mxu0 0.0
    %1029 = vmatpush1.xpose.msra.mxu0 0.0
    %1030 = vmatprep.subr.mxu0 0.0
    %1031 = vmatpush1.xpose.msra.mxu0 0.0
    %1032 = vmatprep.subr.mxu0 0.0
    %1033 = vmatpush1.xpose.msra.mxu0 0.0
    %1034 = vmatprep.subr.mxu0 0.0
    %1035 = vmatpush1.xpose.msra.mxu0 0.0
    %1036 = vmatprep.subr.mxu0 0.0
    %1037 = vmatpush1.xpose.msra.mxu0 0.0
    %1038 = vmatprep.subr.mxu0 0.0
    %1039 = vmatpush1.xpose.msra.mxu0 0.0
    %1040 = vmatprep.subr.mxu0 0.0
    %1041 = vmatpush1.xpose.msra.mxu0 0.0
    %1042 = vmatprep.subr.mxu0 0.0
    %1043 = vmatpush1.xpose.msra.mxu0 0.0
    %1044 = vmatprep.mubr.f32.mxu0 0.0
    %1045 = vmatmul.mubr.f32.gmra.mrb[0].mxu0 %v976
    %v1046 = vpop.f32.mrb[0].mxu0
    %v1047 = vadd.f32 0.0, %v1046
    %v1048 = vpop.f32.mrb[0].mxu0
    %1049 = vdwg.mxu0
    %v1050 = vmul.f32 %v1047, 0.35355338
    %v1051 = vsel %vm292, %v1050, -inf
    %1052 = vmax.xlane.f32.xlu0 %v1051
    %v1053 = vpop.xlane.xlu0 %1052
    %v1054 = vsub.f32 %v1050, %v1053
    %v1055 = vmul.f32 %v1054, 1.442695
    %v1056 = vpow.pop %v1055
    %v1057 = vsel %vm292, %v1056, 0.0
    %1058 = vadd.xlane.f32.xlu0 %v1057
    %v1059 = vpop.xlane.xlu0 %1058
    %v1060 = vrcp.pop %v1059
    %v1061 = vmul.f32 %v1056, %v1060
    %1063 = vrot.lane.b32.xlu0 %v286, 64
    %v1064 = vpop.permute.xlu0 %1063
    %v1067 = vsel %vm292, %v1061, 0
    %1069 = vmatprep.subr.mxu0 0.0
    %1070 = vmatpush1.msra.mxu0 %v1064
    %1071 = vmatprep.subr.mxu0 0.0
    %1072 = vmatpush1.msra.mxu0 0.0
    %1073 = vmatprep.subr.mxu0 0.0
    %1074 = vmatpush1.msra.mxu0 0.0
    %1075 = vmatprep.subr.mxu0 0.0
    %1076 = vmatpush1.msra.mxu0 0.0
    %1077 = vmatprep.subr.mxu0 0.0
    %1078 = vmatpush1.msra.mxu0 0.0
    %1079 = vmatprep.subr.mxu0 0.0
    %1080 = vmatpush1.msra.mxu0 0.0
    %1081 = vmatprep.subr.mxu0 0.0
    %1082 = vmatpush1.msra.mxu0 0.0
    %1083 = vmatprep.subr.mxu0 0.0
    %1084 = vmatpush1.msra.mxu0 0.0
    %1085 = vmatprep.subr.mxu0 0.0
    %1086 = vmatpush1.msra.mxu0 0.0
    %1087 = vmatprep.subr.mxu0 0.0
    %1088 = vmatpush1.msra.mxu0 0.0
    %1089 = vmatprep.subr.mxu0 0.0
    %1090 = vmatpush1.msra.mxu0 0.0
    %1091 = vmatprep.subr.mxu0 0.0
    %1092 = vmatpush1.msra.mxu0 0.0
    %1093 = vmatprep.subr.mxu0 0.0
    %1094 = vmatpush1.msra.mxu0 0.0
    %1095 = vmatprep.subr.mxu0 0.0
    %1096 = vmatpush1.msra.mxu0 0.0
    %1097 = vmatprep.subr.mxu0 0.0
    %1098 = vmatpush1.msra.mxu0 0.0
    %1099 = vmatprep.subr.mxu0 0.0
    %1100 = vmatpush1.msra.mxu0 0.0
    %1101 = vmatprep.subr.mxu0 0.0
    %1102 = vmatpush1.msra.mxu0 0.0
    %1103 = vmatprep.subr.mxu0 0.0
    %1104 = vmatpush1.msra.mxu0 0.0
    %1105 = vmatprep.subr.mxu0 0.0
    %1106 = vmatpush1.msra.mxu0 0.0
    %1107 = vmatprep.subr.mxu0 0.0
    %1108 = vmatpush1.msra.mxu0 0.0
    %1109 = vmatprep.subr.mxu0 0.0
    %1110 = vmatpush1.msra.mxu0 0.0
    %1111 = vmatprep.subr.mxu0 0.0
    %1112 = vmatpush1.msra.mxu0 0.0
    %1113 = vmatprep.subr.mxu0 0.0
    %1114 = vmatpush1.msra.mxu0 0.0
    %1115 = vmatprep.subr.mxu0 0.0
    %1116 = vmatpush1.msra.mxu0 0.0
    %1117 = vmatprep.subr.mxu0 0.0
    %1118 = vmatpush1.msra.mxu0 0.0
    %1119 = vmatprep.subr.mxu0 0.0
    %1120 = vmatpush1.msra.mxu0 0.0
    %1121 = vmatprep.subr.mxu0 0.0
    %1122 = vmatpush1.msra.mxu0 0.0
    %1123 = vmatprep.subr.mxu0 0.0
    %1124 = vmatpush1.msra.mxu0 0.0
    %1125 = vmatprep.subr.mxu0 0.0
    %1126 = vmatpush1.msra.mxu0 0.0
    %1127 = vmatprep.subr.mxu0 0.0
    %1128 = vmatpush1.msra.mxu0 0.0
    %1129 = vmatprep.subr.mxu0 0.0
    %1130 = vmatpush1.msra.mxu0 0.0
    %1131 = vmatprep.subr.mxu0 0.0
    %1132 = vmatpush1.msra.mxu0 0.0
    %1133 = vmatprep.mubr.f32.mxu0 0.0
    %1134 = vmatmul.mubr.f32.gmra.mrb[0].mxu0 %v1067
    %v1135 = vpop.f32.mrb[0].mxu0
    %v1136 = vadd.f32 0.0, %v1135
    %v1137 = vpop.f32.mrb[0].mxu0
    %1138 = vdwg.mxu0
    %1139 = vst.msk [vmem:[#allocation2 + $0x8] sm:$0xff] %vm292, %v1136
    %1140 = vrot.lane.b32.xlu0 %v276, 120
    %v1141 = vpop.permute.xlu0 %1140
    %1142 = vrot.lane.b32.xlu0 %v276, 88
    %v1143 = vpop.permute.xlu0 %1142
    %v1144 = vsel %vm292, %v1141, 0
    %v1146 = vsel %vm292, %v1143, 0
    %1148 = vmatprep.subr.mxu0 0.0
    %1149 = vmatpush1.xpose.msra.mxu0 %v1146
    %1150 = vmatprep.subr.mxu0 0.0
    %1151 = vmatpush1.xpose.msra.mxu0 0.0
    %1152 = vmatprep.subr.mxu0 0.0
    %1153 = vmatpush1.xpose.msra.mxu0 0.0
    %1154 = vmatprep.subr.mxu0 0.0
    %1155 = vmatpush1.xpose.msra.mxu0 0.0
    %1156 = vmatprep.subr.mxu0 0.0
    %1157 = vmatpush1.xpose.msra.mxu0 0.0
    %1158 = vmatprep.subr.mxu0 0.0
    %1159 = vmatpush1.xpose.msra.mxu0 0.0
    %1160 = vmatprep.subr.mxu0 0.0
    %1161 = vmatpush1.xpose.msra.mxu0 0.0
    %1162 = vmatprep.subr.mxu0 0.0
    %1163 = vmatpush1.xpose.msra.mxu0 0.0
    %1164 = vmatprep.subr.mxu0 0.0
    %1165 = vmatpush1.xpose.msra.mxu0 0.0
    %1166 = vmatprep.subr.mxu0 0.0
    %1167 = vmatpush1.xpose.msra.mxu0 0.0
    %1168 = vmatprep.subr.mxu0 0.0
    %1169 = vmatpush1.xpose.msra.mxu0 0.0
    %1170 = vmatprep.subr.mxu0 0.0
    %1171 = vmatpush1.xpose.msra.mxu0 0.0
    %1172 = vmatprep.subr.mxu0 0.0
    %1173 = vmatpush1.xpose.msra.mxu0 0.0
    %1174 = vmatprep.subr.mxu0 0.0
    %1175 = vmatpush1.xpose.msra.mxu0 0.0
    %1176 = vmatprep.subr.mxu0 0.0
    %1177 = vmatpush1.xpose.msra.mxu0 0.0
    %1178 = vmatprep.subr.mxu0 0.0
    %1179 = vmatpush1.xpose.msra.mxu0 0.0
    %1180 = vmatprep.subr.mxu0 0.0
    %1181 = vmatpush1.xpose.msra.mxu0 0.0
    %1182 = vmatprep.subr.mxu0 0.0
    %1183 = vmatpush1.xpose.msra.mxu0 0.0
    %1184 = vmatprep.subr.mxu0 0.0
    %1185 = vmatpush1.xpose.msra.mxu0 0.0
    %1186 = vmatprep.subr.mxu0 0.0
    %1187 = vmatpush1.xpose.msra.mxu0 0.0
    %1188 = vmatprep.subr.mxu0 0.0
    %1189 = vmatpush1.xpose.msra.mxu0 0.0
    %1190 = vmatprep.subr.mxu0 0.0
    %1191 = vmatpush1.xpose.msra.mxu0 0.0
    %1192 = vmatprep.subr.mxu0 0.0
    %1193 = vmatpush1.xpose.msra.mxu0 0.0
    %1194 = vmatprep.subr.mxu0 0.0
    %1195 = vmatpush1.xpose.msra.mxu0 0.0
    %1196 = vmatprep.subr.mxu0 0.0
    %1197 = vmatpush1.xpose.msra.mxu0 0.0
    %1198 = vmatprep.subr.mxu0 0.0
    %1199 = vmatpush1.xpose.msra.mxu0 0.0
    %1200 = vmatprep.subr.mxu0 0.0
    %1201 = vmatpush1.xpose.msra.mxu0 0.0
    %1202 = vmatprep.subr.mxu0 0.0
    %1203 = vmatpush1.xpose.msra.mxu0 0.0
    %1204 = vmatprep.subr.mxu0 0.0
    %1205 = vmatpush1.xpose.msra.mxu0 0.0
    %1206 = vmatprep.subr.mxu0 0.0
    %1207 = vmatpush1.xpose.msra.mxu0 0.0
    %1208 = vmatprep.subr.mxu0 0.0
    %1209 = vmatpush1.xpose.msra.mxu0 0.0
    %1210 = vmatprep.subr.mxu0 0.0
    %1211 = vmatpush1.xpose.msra.mxu0 0.0
    %1212 = vmatprep.mubr.f32.mxu0 0.0
    %1213 = vmatmul.mubr.f32.gmra.mrb[0].mxu0 %v1144
    %v1214 = vpop.f32.mrb[0].mxu0
    %v1215 = vadd.f32 0.0, %v1214
    %v1216 = vpop.f32.mrb[0].mxu0
    %1217 = vdwg.mxu0
    %v1218 = vmul.f32 %v1215, 0.35355338
    %v1219 = vsel %vm292, %v1218, -inf
    %1220 = vmax.xlane.f32.xlu0 %v1219
    %v1221 = vpop.xlane.xlu0 %1220
    %v1222 = vsub.f32 %v1218, %v1221
    %v1223 = vmul.f32 %v1222, 1.442695
    %v1224 = vpow.pop %v1223
    %v1225 = vsel %vm292, %v1224, 0.0
    %1226 = vadd.xlane.f32.xlu0 %v1225
    %v1227 = vpop.xlane.xlu0 %1226
    %v1228 = vrcp.pop %v1227
    %v1229 = vmul.f32 %v1224, %v1228
    %1230 = vrot.lane.b32.xlu0 %v286, 56
    %v1231 = vpop.permute.xlu0 %1230
    %v1234 = vsel %vm292, %v1229, 0
    %1236 = vmatprep.subr.mxu0 0.0
    %1237 = vmatpush1.msra.mxu0 %v1231
    %1238 = vmatprep.subr.mxu0 0.0
    %1239 = vmatpush1.msra.mxu0 0.0
    %1240 = vmatprep.subr.mxu0 0.0
    %1241 = vmatpush1.msra.mxu0 0.0
    %1242 = vmatprep.subr.mxu0 0.0
    %1243 = vmatpush1.msra.mxu0 0.0
    %1244 = vmatprep.subr.mxu0 0.0
    %1245 = vmatpush1.msra.mxu0 0.0
    %1246 = vmatprep.subr.mxu0 0.0
    %1247 = vmatpush1.msra.mxu0 0.0
    %1248 = vmatprep.subr.mxu0 0.0
    %1249 = vmatpush1.msra.mxu0 0.0
    %1250 = vmatprep.subr.mxu0 0.0
    %1251 = vmatpush1.msra.mxu0 0.0
    %1252 = vmatprep.subr.mxu0 0.0
    %1253 = vmatpush1.msra.mxu0 0.0
    %1254 = vmatprep.subr.mxu0 0.0
    %1255 = vmatpush1.msra.mxu0 0.0
    %1256 = vmatprep.subr.mxu0 0.0
    %1257 = vmatpush1.msra.mxu0 0.0
    %1258 = vmatprep.subr.mxu0 0.0
    %1259 = vmatpush1.msra.mxu0 0.0
    %1260 = vmatprep.subr.mxu0 0.0
    %1261 = vmatpush1.msra.mxu0 0.0
    %1262 = vmatprep.subr.mxu0 0.0
    %1263 = vmatpush1.msra.mxu0 0.0
    %1264 = vmatprep.subr.mxu0 0.0
    %1265 = vmatpush1.msra.mxu0 0.0
    %1266 = vmatprep.subr.mxu0 0.0
    %1267 = vmatpush1.msra.mxu0 0.0
    %1268 = vmatprep.subr.mxu0 0.0
    %1269 = vmatpush1.msra.mxu0 0.0
    %1270 = vmatprep.subr.mxu0 0.0
    %1271 = vmatpush1.msra.mxu0 0.0
    %1272 = vmatprep.subr.mxu0 0.0
    %1273 = vmatpush1.msra.mxu0 0.0
    %1274 = vmatprep.subr.mxu0 0.0
    %1275 = vmatpush1.msra.mxu0 0.0
    %1276 = vmatprep.subr.mxu0 0.0
    %1277 = vmatpush1.msra.mxu0 0.0
    %1278 = vmatprep.subr.mxu0 0.0
    %1279 = vmatpush1.msra.mxu0 0.0
    %1280 = vmatprep.subr.mxu0 0.0
    %1281 = vmatpush1.msra.mxu0 0.0
    %1282 = vmatprep.subr.mxu0 0.0
    %1283 = vmatpush1.msra.mxu0 0.0
    %1284 = vmatprep.subr.mxu0 0.0
    %1285 = vmatpush1.msra.mxu0 0.0
    %1286 = vmatprep.subr.mxu0 0.0
    %1287 = vmatpush1.msra.mxu0 0.0
    %1288 = vmatprep.subr.mxu0 0.0
    %1289 = vmatpush1.msra.mxu0 0.0
    %1290 = vmatprep.subr.mxu0 0.0
    %1291 = vmatpush1.msra.mxu0 0.0
    %1292 = vmatprep.subr.mxu0 0.0
    %1293 = vmatpush1.msra.mxu0 0.0
    %1294 = vmatprep.subr.mxu0 0.0
    %1295 = vmatpush1.msra.mxu0 0.0
    %1296 = vmatprep.subr.mxu0 0.0
    %1297 = vmatpush1.msra.mxu0 0.0
    %1298 = vmatprep.subr.mxu0 0.0
    %1299 = vmatpush1.msra.mxu0 0.0
    %1300 = vmatprep.mubr.f32.mxu0 0.0
    %1301 = vmatmul.mubr.f32.gmra.mrb[0].mxu0 %v1234
    %v1302 = vpop.f32.mrb[0].mxu0
    %v1303 = vadd.f32 0.0, %v1302
    %v1304 = vpop.f32.mrb[0].mxu0
    %1305 = vdwg.mxu0
    %1307 = vrot.lane.b32.xlu0 %v1303, 8
    %v1308 = vpop.permute.xlu0 %1307
    %1310 = vst.msk [vmem:[#allocation2 + $0x8] sm:$0xff] %vm627, %v1308
    %1311 = vrot.lane.b32.xlu0 %v276, 112
    %v1312 = vpop.permute.xlu0 %1311
    %1313 = vrot.lane.b32.xlu0 %v276, 80
    %v1314 = vpop.permute.xlu0 %1313
    %v1315 = vsel %vm292, %v1312, 0
    %v1317 = vsel %vm292, %v1314, 0
    %1319 = vmatprep.subr.mxu0 0.0
    %1320 = vmatpush1.xpose.msra.mxu0 %v1317
    %1321 = vmatprep.subr.mxu0 0.0
    %1322 = vmatpush1.xpose.msra.mxu0 0.0
    %1323 = vmatprep.subr.mxu0 0.0
    %1324 = vmatpush1.xpose.msra.mxu0 0.0
    %1325 = vmatprep.subr.mxu0 0.0
    %1326 = vmatpush1.xpose.msra.mxu0 0.0
    %1327 = vmatprep.subr.mxu0 0.0
    %1328 = vmatpush1.xpose.msra.mxu0 0.0
    %1329 = vmatprep.subr.mxu0 0.0
    %1330 = vmatpush1.xpose.msra.mxu0 0.0
    %1331 = vmatprep.subr.mxu0 0.0
    %1332 = vmatpush1.xpose.msra.mxu0 0.0
    %1333 = vmatprep.subr.mxu0 0.0
    %1334 = vmatpush1.xpose.msra.mxu0 0.0
    %1335 = vmatprep.subr.mxu0 0.0
    %1336 = vmatpush1.xpose.msra.mxu0 0.0
    %1337 = vmatprep.subr.mxu0 0.0
    %1338 = vmatpush1.xpose.msra.mxu0 0.0
    %1339 = vmatprep.subr.mxu0 0.0
    %1340 = vmatpush1.xpose.msra.mxu0 0.0
    %1341 = vmatprep.subr.mxu0 0.0
    %1342 = vmatpush1.xpose.msra.mxu0 0.0
    %1343 = vmatprep.subr.mxu0 0.0
    %1344 = vmatpush1.xpose.msra.mxu0 0.0
    %1345 = vmatprep.subr.mxu0 0.0
    %1346 = vmatpush1.xpose.msra.mxu0 0.0
    %1347 = vmatprep.subr.mxu0 0.0
    %1348 = vmatpush1.xpose.msra.mxu0 0.0
    %1349 = vmatprep.subr.mxu0 0.0
    %1350 = vmatpush1.xpose.msra.mxu0 0.0
    %1351 = vmatprep.subr.mxu0 0.0
    %1352 = vmatpush1.xpose.msra.mxu0 0.0
    %1353 = vmatprep.subr.mxu0 0.0
    %1354 = vmatpush1.xpose.msra.mxu0 0.0
    %1355 = vmatprep.subr.mxu0 0.0
    %1356 = vmatpush1.xpose.msra.mxu0 0.0
    %1357 = vmatprep.subr.mxu0 0.0
    %1358 = vmatpush1.xpose.msra.mxu0 0.0
    %1359 = vmatprep.subr.mxu0 0.0
    %1360 = vmatpush1.xpose.msra.mxu0 0.0
    %1361 = vmatprep.subr.mxu0 0.0
    %1362 = vmatpush1.xpose.msra.mxu0 0.0
    %1363 = vmatprep.subr.mxu0 0.0
    %1364 = vmatpush1.xpose.msra.mxu0 0.0
    %1365 = vmatprep.subr.mxu0 0.0
    %1366 = vmatpush1.xpose.msra.mxu0 0.0
    %1367 = vmatprep.subr.mxu0 0.0
    %1368 = vmatpush1.xpose.msra.mxu0 0.0
    %1369 = vmatprep.subr.mxu0 0.0
    %1370 = vmatpush1.xpose.msra.mxu0 0.0
    %1371 = vmatprep.subr.mxu0 0.0
    %1372 = vmatpush1.xpose.msra.mxu0 0.0
    %1373 = vmatprep.subr.mxu0 0.0
    %1374 = vmatpush1.xpose.msra.mxu0 0.0
    %1375 = vmatprep.subr.mxu0 0.0
    %1376 = vmatpush1.xpose.msra.mxu0 0.0
    %1377 = vmatprep.subr.mxu0 0.0
    %1378 = vmatpush1.xpose.msra.mxu0 0.0
    %1379 = vmatprep.subr.mxu0 0.0
    %1380 = vmatpush1.xpose.msra.mxu0 0.0
    %1381 = vmatprep.subr.mxu0 0.0
    %1382 = vmatpush1.xpose.msra.mxu0 0.0
    %1383 = vmatprep.mubr.f32.mxu0 0.0
    %1384 = vmatmul.mubr.f32.gmra.mrb[0].mxu0 %v1315
    %v1385 = vpop.f32.mrb[0].mxu0
    %v1386 = vadd.f32 0.0, %v1385
    %v1387 = vpop.f32.mrb[0].mxu0
    %1388 = vdwg.mxu0
    %v1389 = vmul.f32 %v1386, 0.35355338
    %v1390 = vsel %vm292, %v1389, -inf
    %1391 = vmax.xlane.f32.xlu0 %v1390
    %v1392 = vpop.xlane.xlu0 %1391
    %v1393 = vsub.f32 %v1389, %v1392
    %v1394 = vmul.f32 %v1393, 1.442695
    %v1395 = vpow.pop %v1394
    %v1396 = vsel %vm292, %v1395, 0.0
    %1397 = vadd.xlane.f32.xlu0 %v1396
    %v1398 = vpop.xlane.xlu0 %1397
    %v1399 = vrcp.pop %v1398
    %v1400 = vmul.f32 %v1395, %v1399
    %1401 = vrot.lane.b32.xlu0 %v286, 48
    %v1402 = vpop.permute.xlu0 %1401
    %v1405 = vsel %vm292, %v1400, 0
    %1407 = vmatprep.subr.mxu0 0.0
    %1408 = vmatpush1.msra.mxu0 %v1402
    %1409 = vmatprep.subr.mxu0 0.0
    %1410 = vmatpush1.msra.mxu0 0.0
    %1411 = vmatprep.subr.mxu0 0.0
    %1412 = vmatpush1.msra.mxu0 0.0
    %1413 = vmatprep.subr.mxu0 0.0
    %1414 = vmatpush1.msra.mxu0 0.0
    %1415 = vmatprep.subr.mxu0 0.0
    %1416 = vmatpush1.msra.mxu0 0.0
    %1417 = vmatprep.subr.mxu0 0.0
    %1418 = vmatpush1.msra.mxu0 0.0
    %1419 = vmatprep.subr.mxu0 0.0
    %1420 = vmatpush1.msra.mxu0 0.0
    %1421 = vmatprep.subr.mxu0 0.0
    %1422 = vmatpush1.msra.mxu0 0.0
    %1423 = vmatprep.subr.mxu0 0.0
    %1424 = vmatpush1.msra.mxu0 0.0
    %1425 = vmatprep.subr.mxu0 0.0
    %1426 = vmatpush1.msra.mxu0 0.0
    %1427 = vmatprep.subr.mxu0 0.0
    %1428 = vmatpush1.msra.mxu0 0.0
    %1429 = vmatprep.subr.mxu0 0.0
    %1430 = vmatpush1.msra.mxu0 0.0
    %1431 = vmatprep.subr.mxu0 0.0
    %1432 = vmatpush1.msra.mxu0 0.0
    %1433 = vmatprep.subr.mxu0 0.0
    %1434 = vmatpush1.msra.mxu0 0.0
    %1435 = vmatprep.subr.mxu0 0.0
    %1436 = vmatpush1.msra.mxu0 0.0
    %1437 = vmatprep.subr.mxu0 0.0
    %1438 = vmatpush1.msra.mxu0 0.0
    %1439 = vmatprep.subr.mxu0 0.0
    %1440 = vmatpush1.msra.mxu0 0.0
    %1441 = vmatprep.subr.mxu0 0.0
    %1442 = vmatpush1.msra.mxu0 0.0
    %1443 = vmatprep.subr.mxu0 0.0
    %1444 = vmatpush1.msra.mxu0 0.0
    %1445 = vmatprep.subr.mxu0 0.0
    %1446 = vmatpush1.msra.mxu0 0.0
    %1447 = vmatprep.subr.mxu0 0.0
    %1448 = vmatpush1.msra.mxu0 0.0
    %1449 = vmatprep.subr.mxu0 0.0
    %1450 = vmatpush1.msra.mxu0 0.0
    %1451 = vmatprep.subr.mxu0 0.0
    %1452 = vmatpush1.msra.mxu0 0.0
    %1453 = vmatprep.subr.mxu0 0.0
    %1454 = vmatpush1.msra.mxu0 0.0
    %1455 = vmatprep.subr.mxu0 0.0
    %1456 = vmatpush1.msra.mxu0 0.0
    %1457 = vmatprep.subr.mxu0 0.0
    %1458 = vmatpush1.msra.mxu0 0.0
    %1459 = vmatprep.subr.mxu0 0.0
    %1460 = vmatpush1.msra.mxu0 0.0
    %1461 = vmatprep.subr.mxu0 0.0
    %1462 = vmatpush1.msra.mxu0 0.0
    %1463 = vmatprep.subr.mxu0 0.0
    %1464 = vmatpush1.msra.mxu0 0.0
    %1465 = vmatprep.subr.mxu0 0.0
    %1466 = vmatpush1.msra.mxu0 0.0
    %1467 = vmatprep.subr.mxu0 0.0
    %1468 = vmatpush1.msra.mxu0 0.0
    %1469 = vmatprep.subr.mxu0 0.0
    %1470 = vmatpush1.msra.mxu0 0.0
    %1471 = vmatprep.mubr.f32.mxu0 0.0
    %1472 = vmatmul.mubr.f32.gmra.mrb[0].mxu0 %v1405
    %v1473 = vpop.f32.mrb[0].mxu0
    %v1474 = vadd.f32 0.0, %v1473
    %v1475 = vpop.f32.mrb[0].mxu0
    %1476 = vdwg.mxu0
    %1478 = vrot.lane.b32.xlu0 %v1474, 16
    %v1479 = vpop.permute.xlu0 %1478
    %1481 = vst.msk [vmem:[#allocation2 + $0x8] sm:$0xff] %vm799, %v1479
    %1482 = vrot.lane.b32.xlu0 %v276, 104
    %v1483 = vpop.permute.xlu0 %1482
    %1484 = vrot.lane.b32.xlu0 %v276, 72
    %v1485 = vpop.permute.xlu0 %1484
    %v1486 = vsel %vm292, %v1483, 0
    %v1488 = vsel %vm292, %v1485, 0
    %1490 = vmatprep.subr.mxu0 0.0
    %1491 = vmatpush1.xpose.msra.mxu0 %v1488
    %1492 = vmatprep.subr.mxu0 0.0
    %1493 = vmatpush1.xpose.msra.mxu0 0.0
    %1494 = vmatprep.subr.mxu0 0.0
    %1495 = vmatpush1.xpose.msra.mxu0 0.0
    %1496 = vmatprep.subr.mxu0 0.0
    %1497 = vmatpush1.xpose.msra.mxu0 0.0
    %1498 = vmatprep.subr.mxu0 0.0
    %1499 = vmatpush1.xpose.msra.mxu0 0.0
    %1500 = vmatprep.subr.mxu0 0.0
    %1501 = vmatpush1.xpose.msra.mxu0 0.0
    %1502 = vmatprep.subr.mxu0 0.0
    %1503 = vmatpush1.xpose.msra.mxu0 0.0
    %1504 = vmatprep.subr.mxu0 0.0
    %1505 = vmatpush1.xpose.msra.mxu0 0.0
    %1506 = vmatprep.subr.mxu0 0.0
    %1507 = vmatpush1.xpose.msra.mxu0 0.0
    %1508 = vmatprep.subr.mxu0 0.0
    %1509 = vmatpush1.xpose.msra.mxu0 0.0
    %1510 = vmatprep.subr.mxu0 0.0
    %1511 = vmatpush1.xpose.msra.mxu0 0.0
    %1512 = vmatprep.subr.mxu0 0.0
    %1513 = vmatpush1.xpose.msra.mxu0 0.0
    %1514 = vmatprep.subr.mxu0 0.0
    %1515 = vmatpush1.xpose.msra.mxu0 0.0
    %1516 = vmatprep.subr.mxu0 0.0
    %1517 = vmatpush1.xpose.msra.mxu0 0.0
    %1518 = vmatprep.subr.mxu0 0.0
    %1519 = vmatpush1.xpose.msra.mxu0 0.0
    %1520 = vmatprep.subr.mxu0 0.0
    %1521 = vmatpush1.xpose.msra.mxu0 0.0
    %1522 = vmatprep.subr.mxu0 0.0
    %1523 = vmatpush1.xpose.msra.mxu0 0.0
    %1524 = vmatprep.subr.mxu0 0.0
    %1525 = vmatpush1.xpose.msra.mxu0 0.0
    %1526 = vmatprep.subr.mxu0 0.0
    %1527 = vmatpush1.xpose.msra.mxu0 0.0
    %1528 = vmatprep.subr.mxu0 0.0
    %1529 = vmatpush1.xpose.msra.mxu0 0.0
    %1530 = vmatprep.subr.mxu0 0.0
    %1531 = vmatpush1.xpose.msra.mxu0 0.0
    %1532 = vmatprep.subr.mxu0 0.0
    %1533 = vmatpush1.xpose.msra.mxu0 0.0
    %1534 = vmatprep.subr.mxu0 0.0
    %1535 = vmatpush1.xpose.msra.mxu0 0.0
    %1536 = vmatprep.subr.mxu0 0.0
    %1537 = vmatpush1.xpose.msra.mxu0 0.0
    %1538 = vmatprep.subr.mxu0 0.0
    %1539 = vmatpush1.xpose.msra.mxu0 0.0
    %1540 = vmatprep.subr.mxu0 0.0
    %1541 = vmatpush1.xpose.msra.mxu0 0.0
    %1542 = vmatprep.subr.mxu0 0.0
    %1543 = vmatpush1.xpose.msra.mxu0 0.0
    %1544 = vmatprep.subr.mxu0 0.0
    %1545 = vmatpush1.xpose.msra.mxu0 0.0
    %1546 = vmatprep.subr.mxu0 0.0
    %1547 = vmatpush1.xpose.msra.mxu0 0.0
    %1548 = vmatprep.subr.mxu0 0.0
    %1549 = vmatpush1.xpose.msra.mxu0 0.0
    %1550 = vmatprep.subr.mxu0 0.0
    %1551 = vmatpush1.xpose.msra.mxu0 0.0
    %1552 = vmatprep.subr.mxu0 0.0
    %1553 = vmatpush1.xpose.msra.mxu0 0.0
    %1554 = vmatprep.mubr.f32.mxu0 0.0
    %1555 = vmatmul.mubr.f32.gmra.mrb[0].mxu0 %v1486
    %v1556 = vpop.f32.mrb[0].mxu0
    %v1557 = vadd.f32 0.0, %v1556
    %v1558 = vpop.f32.mrb[0].mxu0
    %1559 = vdwg.mxu0
    %v1560 = vmul.f32 %v1557, 0.35355338
    %v1561 = vsel %vm292, %v1560, -inf
    %1562 = vmax.xlane.f32.xlu0 %v1561
    %v1563 = vpop.xlane.xlu0 %1562
    %v1564 = vsub.f32 %v1560, %v1563
    %v1565 = vmul.f32 %v1564, 1.442695
    %v1566 = vpow.pop %v1565
    %v1567 = vsel %vm292, %v1566, 0.0
    %1568 = vadd.xlane.f32.xlu0 %v1567
    %v1569 = vpop.xlane.xlu0 %1568
    %v1570 = vrcp.pop %v1569
    %v1571 = vmul.f32 %v1566, %v1570
    %1572 = vrot.lane.b32.xlu0 %v286, 40
    %v1573 = vpop.permute.xlu0 %1572
    %v1576 = vsel %vm292, %v1571, 0
    %1578 = vmatprep.subr.mxu0 0.0
    %1579 = vmatpush1.msra.mxu0 %v1573
    %1580 = vmatprep.subr.mxu0 0.0
    %1581 = vmatpush1.msra.mxu0 0.0
    %1582 = vmatprep.subr.mxu0 0.0
    %1583 = vmatpush1.msra.mxu0 0.0
    %1584 = vmatprep.subr.mxu0 0.0
    %1585 = vmatpush1.msra.mxu0 0.0
    %1586 = vmatprep.subr.mxu0 0.0
    %1587 = vmatpush1.msra.mxu0 0.0
    %1588 = vmatprep.subr.mxu0 0.0
    %1589 = vmatpush1.msra.mxu0 0.0
    %1590 = vmatprep.subr.mxu0 0.0
    %1591 = vmatpush1.msra.mxu0 0.0
    %1592 = vmatprep.subr.mxu0 0.0
    %1593 = vmatpush1.msra.mxu0 0.0
    %1594 = vmatprep.subr.mxu0 0.0
    %1595 = vmatpush1.msra.mxu0 0.0
    %1596 = vmatprep.subr.mxu0 0.0
    %1597 = vmatpush1.msra.mxu0 0.0
    %1598 = vmatprep.subr.mxu0 0.0
    %1599 = vmatpush1.msra.mxu0 0.0
    %1600 = vmatprep.subr.mxu0 0.0
    %1601 = vmatpush1.msra.mxu0 0.0
    %1602 = vmatprep.subr.mxu0 0.0
    %1603 = vmatpush1.msra.mxu0 0.0
    %1604 = vmatprep.subr.mxu0 0.0
    %1605 = vmatpush1.msra.mxu0 0.0
    %1606 = vmatprep.subr.mxu0 0.0
    %1607 = vmatpush1.msra.mxu0 0.0
    %1608 = vmatprep.subr.mxu0 0.0
    %1609 = vmatpush1.msra.mxu0 0.0
    %1610 = vmatprep.subr.mxu0 0.0
    %1611 = vmatpush1.msra.mxu0 0.0
    %1612 = vmatprep.subr.mxu0 0.0
    %1613 = vmatpush1.msra.mxu0 0.0
    %1614 = vmatprep.subr.mxu0 0.0
    %1615 = vmatpush1.msra.mxu0 0.0
    %1616 = vmatprep.subr.mxu0 0.0
    %1617 = vmatpush1.msra.mxu0 0.0
    %1618 = vmatprep.subr.mxu0 0.0
    %1619 = vmatpush1.msra.mxu0 0.0
    %1620 = vmatprep.subr.mxu0 0.0
    %1621 = vmatpush1.msra.mxu0 0.0
    %1622 = vmatprep.subr.mxu0 0.0
    %1623 = vmatpush1.msra.mxu0 0.0
    %1624 = vmatprep.subr.mxu0 0.0
    %1625 = vmatpush1.msra.mxu0 0.0
    %1626 = vmatprep.subr.mxu0 0.0
    %1627 = vmatpush1.msra.mxu0 0.0
    %1628 = vmatprep.subr.mxu0 0.0
    %1629 = vmatpush1.msra.mxu0 0.0
    %1630 = vmatprep.subr.mxu0 0.0
    %1631 = vmatpush1.msra.mxu0 0.0
    %1632 = vmatprep.subr.mxu0 0.0
    %1633 = vmatpush1.msra.mxu0 0.0
    %1634 = vmatprep.subr.mxu0 0.0
    %1635 = vmatpush1.msra.mxu0 0.0
    %1636 = vmatprep.subr.mxu0 0.0
    %1637 = vmatpush1.msra.mxu0 0.0
    %1638 = vmatprep.subr.mxu0 0.0
    %1639 = vmatpush1.msra.mxu0 0.0
    %1640 = vmatprep.subr.mxu0 0.0
    %1641 = vmatpush1.msra.mxu0 0.0
    %1642 = vmatprep.mubr.f32.mxu0 0.0
    %1643 = vmatmul.mubr.f32.gmra.mrb[0].mxu0 %v1576
    %v1644 = vpop.f32.mrb[0].mxu0
    %v1645 = vadd.f32 0.0, %v1644
    %v1646 = vpop.f32.mrb[0].mxu0
    %1647 = vdwg.mxu0
    %1649 = vrot.lane.b32.xlu0 %v1645, 24
    %v1650 = vpop.permute.xlu0 %1649
    %1652 = vst.msk [vmem:[#allocation2 + $0x8] sm:$0xff] %vm971, %v1650
    %v1653 = vld [vmem:[%s5] sm:$0x7]
    %v1654 = vld [vmem:[#allocation2] sm:$0xff]
    %v1655 = vld [vmem:[#allocation2 + $0x8] sm:$0xff]
    %v1656 = vld [vmem:[#allocation9] sm:$0xff]
    %v1657 = vld [vmem:[#allocation9 + $0x8] sm:$0xff]
    %v1658 = vld [vmem:[#allocation9 + $0x10] sm:$0xff]
    %v1659 = vld [vmem:[#allocation9 + $0x18] sm:$0xff]
    %v1660 = vlaneseq
    %v1661 = vshrl.u32 %v1660, 7
    %v1662 = vsub.s32 0, %v1661
    %v1663 = vrot.slane %v1653, %v1662
    %v1665 = vsel %vm195, %v1654, 0
    %v1668 = vsel %vm195, %v1655, 0
    %1670 = vmatprep.subr.mxu0 0.0
    %1671 = vmatpush1.msra.mxu0 %v1656
    %1672 = vmatprep.subr.mxu0 0.0
    %1673 = vmatpush1.msra.mxu0 %v1657
    %1674 = vmatprep.subr.mxu0 0.0
    %1675 = vmatpush1.msra.mxu0 %v1658
    %1676 = vmatprep.subr.mxu0 0.0
    %1677 = vmatpush1.msra.mxu0 %v1659
    %1678 = vmatprep.subr.mxu0 0.0
    %1679 = vmatpush1.msra.mxu0 0.0
    %1680 = vmatprep.subr.mxu0 0.0
    %1681 = vmatpush1.msra.mxu0 0.0
    %1682 = vmatprep.subr.mxu0 0.0
    %1683 = vmatpush1.msra.mxu0 0.0
    %1684 = vmatprep.subr.mxu0 0.0
    %1685 = vmatpush1.msra.mxu0 0.0
    %1686 = vmatprep.subr.mxu0 0.0
    %1687 = vmatpush1.msra.mxu0 0.0
    %1688 = vmatprep.subr.mxu0 0.0
    %1689 = vmatpush1.msra.mxu0 0.0
    %1690 = vmatprep.subr.mxu0 0.0
    %1691 = vmatpush1.msra.mxu0 0.0
    %1692 = vmatprep.subr.mxu0 0.0
    %1693 = vmatpush1.msra.mxu0 0.0
    %1694 = vmatprep.subr.mxu0 0.0
    %1695 = vmatpush1.msra.mxu0 0.0
    %1696 = vmatprep.subr.mxu0 0.0
    %1697 = vmatpush1.msra.mxu0 0.0
    %1698 = vmatprep.subr.mxu0 0.0
    %1699 = vmatpush1.msra.mxu0 0.0
    %1700 = vmatprep.subr.mxu0 0.0
    %1701 = vmatpush1.msra.mxu0 0.0
    %1702 = vmatprep.subr.mxu0 0.0
    %1703 = vmatpush1.msra.mxu0 0.0
    %1704 = vmatprep.subr.mxu0 0.0
    %1705 = vmatpush1.msra.mxu0 0.0
    %1706 = vmatprep.subr.mxu0 0.0
    %1707 = vmatpush1.msra.mxu0 0.0
    %1708 = vmatprep.subr.mxu0 0.0
    %1709 = vmatpush1.msra.mxu0 0.0
    %1710 = vmatprep.subr.mxu0 0.0
    %1711 = vmatpush1.msra.mxu0 0.0
    %1712 = vmatprep.subr.mxu0 0.0
    %1713 = vmatpush1.msra.mxu0 0.0
    %1714 = vmatprep.subr.mxu0 0.0
    %1715 = vmatpush1.msra.mxu0 0.0
    %1716 = vmatprep.subr.mxu0 0.0
    %1717 = vmatpush1.msra.mxu0 0.0
    %1718 = vmatprep.subr.mxu0 0.0
    %1719 = vmatpush1.msra.mxu0 0.0
    %1720 = vmatprep.subr.mxu0 0.0
    %1721 = vmatpush1.msra.mxu0 0.0
    %1722 = vmatprep.subr.mxu0 0.0
    %1723 = vmatpush1.msra.mxu0 0.0
    %1724 = vmatprep.subr.mxu0 0.0
    %1725 = vmatpush1.msra.mxu0 0.0
    %1726 = vmatprep.subr.mxu0 0.0
    %1727 = vmatpush1.msra.mxu0 0.0
    %1728 = vmatprep.subr.mxu0 0.0
    %1729 = vmatpush1.msra.mxu0 0.0
    %1730 = vmatprep.subr.mxu0 0.0
    %1731 = vmatpush1.msra.mxu0 0.0
    %1732 = vmatprep.subr.mxu0 0.0
    %1733 = vmatpush1.msra.mxu0 0.0
    %1734 = vmatprep.mubr.f32.mxu0 0.0
    %1735 = vmatmul.mubr.f32.gmra.mrb[0].mxu0 %v1665
    %v1736 = vpop.f32.mrb[0].mxu0
    %v1737 = vadd.f32 %v1663, %v1736
    %v1738 = vpop.f32.mrb[0].mxu0
    %1739 = vmatprep.mubr.f32.mxu0 0.0
    %1740 = vmatmul.mubr.f32.gmra.mrb[0].mxu0 %v1668
    %v1741 = vpop.f32.mrb[0].mxu0
    %v1742 = vadd.f32 %v1663, %v1741
    %v1743 = vpop.f32.mrb[0].mxu0
    %1744 = vdwg.mxu0
    %v1745 = vadd.f32 %v167, %v1737
    %v1746 = vadd.f32 %v182, %v1742
    %v1747 = vsel %vm195, %v1745, 0.0
    %1748 = vadd.xlane.f32.xlu0 %v1747
    %v1749 = vpop.xlane.xlu0 %1748
    %v1750 = vsel %vm195, %v1746, 0.0
    %1751 = vadd.xlane.f32.xlu0 %v1750
    %v1752 = vpop.xlane.xlu0 %1751
    %v1753 = vrcp.pop 32.0
    %v1754 = vmul.f32 %v1749, %v1753
    %v1755 = vmul.f32 %v1752, %v1753
    %v1756 = vsub.f32 %v1745, %v1754
    %v1757 = vsub.f32 %v1746, %v1755
    %v1758 = vmul.f32 %v1756, %v1756
    %v1759 = vmul.f32 %v1757, %v1757
    %v1760 = vsel %vm195, %v1758, 0.0
    %1761 = vadd.xlane.f32.xlu0 %v1760
    %v1762 = vpop.xlane.xlu0 %1761
    %v1763 = vsel %vm195, %v1759, 0.0
    %1764 = vadd.xlane.f32.xlu0 %v1763
    %v1765 = vpop.xlane.xlu0 %1764
    %v1766 = vmul.f32 %v1762, %v1753
    %v1767 = vmul.f32 %v1765, %v1753
    %v1768 = vadd.f32 %v1766, 1e-05
    %v1769 = vadd.f32 %v1767, 1e-05
    %v1770 = vrsqrt.pop %v1768
    %v1771 = vrsqrt.pop %v1769
    %v1772 = vmul.f32 %v1756, %v1770
    %v1773 = vmul.f32 %v1757, %v1771
    %v1774 = vlaneseq
    %v1775 = vshrl.u32 %v1774, 7
    %v1776 = vsub.s32 1, %v1775
    %v1777 = vrot.slane %v1653, %v1776
    %v1778 = vmul.f32 %v1772, %v1777
    %v1779 = vmul.f32 %v1773, %v1777
    %v1780 = vlaneseq
    %v1781 = vshrl.u32 %v1780, 7
    %v1782 = vsub.s32 2, %v1781
    %v1783 = vrot.slane %v1653, %v1782
    %v1784 = vadd.f32 %v1778, %v1783
    %v1785 = vadd.f32 %v1779, %v1783
    %v1787 = vcombine.high %v1784, %v1784
    %v1789 = vunpack.c.l.s4 1966171168
    %v1790 = vunpack.c.0.s8 %v1789
    %v1791 = vlaneseq
    %v1792 = vshrl.u32 %v1791, 7
    %v1793 = vsub.s32 %v1790, %v1792
    %v1794 = vrot.slane %v1784, %v1793
    %v1796 = vunpack.c.l.s4 1966171168
    %v1797 = vunpack.c.0.s8 %v1796
    %v1798 = vlaneseq
    %v1799 = vshrl.u32 %v1798, 7
    %v1800 = vsub.s32 %v1797, %v1799
    %v1801 = vrot.slane %v1787, %v1800
    %v1802 = vcombine.high %v1794, %v1794
    %v1803 = vcombine.high %v1801, %v1801
    %v1805 = vunpack.c.l.s4 1966171168
    %v1806 = vunpack.c.0.s8 %v1805
    %v1807 = vlaneseq
    %v1808 = vshrl.u32 %v1807, 7
    %v1809 = vsub.s32 %v1806, %v1808
    %v1810 = vrot.slane %v1794, %v1809
    %v1812 = vunpack.c.l.s4 1966171168
    %v1813 = vunpack.c.0.s8 %v1812
    %v1814 = vlaneseq
    %v1815 = vshrl.u32 %v1814, 7
    %v1816 = vsub.s32 %v1813, %v1815
    %v1817 = vrot.slane %v1801, %v1816
    %v1819 = vunpack.c.l.s4 1966171168
    %v1820 = vunpack.c.0.s8 %v1819
    %v1821 = vlaneseq
    %v1822 = vshrl.u32 %v1821, 7
    %v1823 = vsub.s32 %v1820, %v1822
    %v1824 = vrot.slane %v1802, %v1823
    %v1826 = vunpack.c.l.s4 1966171168
    %v1827 = vunpack.c.0.s8 %v1826
    %v1828 = vlaneseq
    %v1829 = vshrl.u32 %v1828, 7
    %v1830 = vsub.s32 %v1827, %v1829
    %v1831 = vrot.slane %v1803, %v1830
    %v1832 = vcombine.high %v1810, %v1810
    %v1833 = vcombine.high %v1817, %v1817
    %v1834 = vcombine.high %v1824, %v1824
    %v1835 = vcombine.high %v1831, %v1831
    %v1845 = vcombine.high %v1785, %v1785
    %v1847 = vunpack.c.l.s4 1966171168
    %v1848 = vunpack.c.0.s8 %v1847
    %v1849 = vlaneseq
    %v1850 = vshrl.u32 %v1849, 7
    %v1851 = vsub.s32 %v1848, %v1850
    %v1852 = vrot.slane %v1785, %v1851
    %v1854 = vunpack.c.l.s4 1966171168
    %v1855 = vunpack.c.0.s8 %v1854
    %v1856 = vlaneseq
    %v1857 = vshrl.u32 %v1856, 7
    %v1858 = vsub.s32 %v1855, %v1857
    %v1859 = vrot.slane %v1845, %v1858
    %v1860 = vcombine.high %v1852, %v1852
    %v1861 = vcombine.high %v1859, %v1859
    %v1863 = vunpack.c.l.s4 1966171168
    %v1864 = vunpack.c.0.s8 %v1863
    %v1865 = vlaneseq
    %v1866 = vshrl.u32 %v1865, 7
    %v1867 = vsub.s32 %v1864, %v1866
    %v1868 = vrot.slane %v1852, %v1867
    %v1870 = vunpack.c.l.s4 1966171168
    %v1871 = vunpack.c.0.s8 %v1870
    %v1872 = vlaneseq
    %v1873 = vshrl.u32 %v1872, 7
    %v1874 = vsub.s32 %v1871, %v1873
    %v1875 = vrot.slane %v1859, %v1874
    %v1877 = vunpack.c.l.s4 1966171168
    %v1878 = vunpack.c.0.s8 %v1877
    %v1879 = vlaneseq
    %v1880 = vshrl.u32 %v1879, 7
    %v1881 = vsub.s32 %v1878, %v1880
    %v1882 = vrot.slane %v1860, %v1881
    %v1884 = vunpack.c.l.s4 1966171168
    %v1885 = vunpack.c.0.s8 %v1884
    %v1886 = vlaneseq
    %v1887 = vshrl.u32 %v1886, 7
    %v1888 = vsub.s32 %v1885, %v1887
    %v1889 = vrot.slane %v1861, %v1888
    %v1890 = vcombine.high %v1868, %v1868
    %v1891 = vcombine.high %v1875, %v1875
    %v1892 = vcombine.high %v1882, %v1882
    %v1893 = vcombine.high %v1889, %v1889
    %v1894 = vlaneseq
    %v1895 = vshrl.u32 %v1894, 7
    %v1896 = vsub.s32 0, %v1895
    %v1897 = vrot.slane %v1868, %v1896
    %v1898 = vlaneseq
    %v1899 = vshrl.u32 %v1898, 7
    %v1900 = vsub.s32 0, %v1899
    %v1901 = vrot.slane %v1882, %v1900
    %v1902 = vlaneseq
    %v1903 = vshrl.u32 %v1902, 7
    %v1904 = vsub.s32 0, %v1903
    %v1905 = vrot.slane %v1890, %v1904
    %v1906 = vlaneseq
    %v1907 = vshrl.u32 %v1906, 7
    %v1908 = vsub.s32 0, %v1907
    %v1909 = vrot.slane %v1892, %v1908
    %v1910 = vlaneseq
    %v1911 = vshrl.u32 %v1910, 7
    %v1912 = vsub.s32 0, %v1911
    %v1913 = vrot.slane %v1875, %v1912
    %v1914 = vlaneseq
    %v1915 = vshrl.u32 %v1914, 7
    %v1916 = vsub.s32 0, %v1915
    %v1917 = vrot.slane %v1889, %v1916
    %v1918 = vlaneseq
    %v1919 = vshrl.u32 %v1918, 7
    %v1920 = vsub.s32 0, %v1919
    %v1921 = vrot.slane %v1891, %v1920
    %v1922 = vlaneseq
    %v1923 = vshrl.u32 %v1922, 7
    %v1924 = vsub.s32 0, %v1923
    %v1925 = vrot.slane %v1893, %v1924
    %vm1934 = vcmask 1040384
    %v1935 = vsel %vm1934, %v1810, %v1897
    %v1936 = vsel %vm1934, %v1824, %v1901
    %v1937 = vsel %vm1934, %v1832, %v1905
    %v1938 = vsel %vm1934, %v1834, %v1909
    %v1939 = vsel %vm1934, %v1817, %v1913
    %v1940 = vsel %vm1934, %v1831, %v1917
    %v1941 = vsel %vm1934, %v1833, %v1921
    %v1942 = vsel %vm1934, %v1835, %v1925
    %vm1943 = vcmask 254976
    %1944 = vst.msk [vmem:[#allocation11] sm:$0x3] %vm1943, %v1935
    %1945 = vst.msk [vmem:[#allocation11 + $0x2] sm:$0x3] %vm1943, %v1936
    %1946 = vst.msk [vmem:[#allocation11 + $0x4] sm:$0x3] %vm1943, %v1937
    %1947 = vst.msk [vmem:[#allocation11 + $0x6] sm:$0x3] %vm1943, %v1938
    %1948 = vst.msk [vmem:[#allocation11 + $0x8] sm:$0x3] %vm1943, %v1939
    %1949 = vst.msk [vmem:[#allocation11 + $0xa] sm:$0x3] %vm1943, %v1940
    %1950 = vst.msk [vmem:[#allocation11 + $0xc] sm:$0x3] %vm1943, %v1941
    %1951 = vst.msk [vmem:[#allocation11 + $0xe] sm:$0x3] %vm1943, %v1942
    // Predicated region
    $region42: #{tpu_custom_call.1} parent=1 // pred_check
      _
    $region43: #{tpu_custom_call.1} parent=1 // pred_check_branch
      %1953 = sbr.rel (0) target = $region45
    $region44: #{tpu_custom_call.1} parent=1 // pred_region
      %s1955 = ssub.s32 256, 256
      %1956 = vsyncadd [#allocation5], %s1955
      %s1957 = sshll.u32 [#allocation11], 4
      %s1958 = int_to_ptr.vmem [resolvable:$true] %s1957
      %1963 = dma.vmem_to_hbm [thread:$0]  %s1958, 256, %s6, [#allocation5], 32, 32, 2
    $region45: #{tpu_custom_call.1} parent=1 // pred_fallthru
      _
    // Predicated region
    $region46: #{tpu_custom_call.1} parent=1 // pred_check
      _
    $region47: #{tpu_custom_call.1} parent=1 // pred_check_branch
      %1965 = sbr.rel (0) target = $region49
    $region48: #{tpu_custom_call.1} parent=1 // pred_region
      %1966 = dma.done [#allocation5], 256
    $region49: #{tpu_custom_call.1} parent=1 // pred_fallthru
      _
    %1967 = vsyncpa [#allocation4], 1
    %1968 = vsyncpa [#allocation7], 1
    %1969 = vsyncpa [#allocation10], 1
    %1970 = vsyncpa [#allocation5], 1

</llo_original>
